<compile_context>
chip_gen: v5e
topology: v5e:2x2
jax: 0.10.0
libtpu: 0.0.40
codegen_flags: <defaults>
</compile_context>

<pallas_src>
import functools

import jax
import jax.numpy as jnp
from jax import lax
from jax.experimental import pallas as pl
from jax.experimental.pallas import tpu as pltpu


# ------------------------------- fused kernel --------------------------------

def _gat_encoder_kernel(nf_ref, ef_ref, idxc_ref, idxr_ref, skip_ref,
                        nwb_ref, ewb_ref, wlr_ref, we_ref, attb_ref, out_ref,
                        *, hidden, recep, node_in, edge_in):
    f32 = jnp.float32
    H = hidden
    N = nf_ref.shape[0]
    E = ef_ref.shape[0]
    neg_slope = jnp.float32(0.2)
    big_neg = jnp.float32(-1e30)

    # ---- feature MLPs: ReLU(x @ W + b); bias is the last row of the packed block
    nwb = nwb_ref[...]
    node_emb = jnp.maximum(
        jnp.dot(nf_ref[...], nwb[:node_in, :], preferred_element_type=f32)
        + nwb[node_in:node_in + 1, :], 0.0)                                   # [N, H]
    # edge MLP has one extra output lane (w=0, b=1) so edge_emb_aug[:, H] == 1; the
    # loop_attr matmul below then yields per-node in-degree counts with no XLU sum.
    ewb = ewb_ref[...]
    edge_emb_aug = jnp.maximum(
        jnp.dot(ef_ref[...], ewb[:edge_in, :], preferred_element_type=f32)
        + ewb[edge_in:edge_in + 1, :], 0.0)                                   # [E, H+1]
    edge_emb = edge_emb_aug[:, :H]

    # ---- one-hot gather / scatter matrices built in-kernel from the int32 edge index
    idxc = idxc_ref[...]                                   # [E, 2]  (src | dst) columns
    idxr = idxr_ref[...]                                   # [2, E]  (src / dst) rows
    col_iota = lax.broadcasted_iota(jnp.int32, (E, N), 1)
    g_src = (col_iota == idxc[:, 0:1]).astype(f32)         # [E, N] row j one-hot at src_j
    g_dst = (col_iota == idxc[:, 1:2]).astype(f32)         # [E, N] row j one-hot at dst_j
    row_iota = lax.broadcasted_iota(jnp.int32, (N, E), 0)
    # PyG GATv2Conv calls remove_self_loops() before add_self_loops(): input edges with
    # src == dst are dropped from the softmax / aggregation / 'mean' fill.
    s_dst = jnp.logical_and(row_iota == idxr[1:2, :],
                            idxr[0:1, :] != idxr[1:2, :]).astype(f32)         # [N, E]

    # ---- add_self_loops(fill_value='mean'): self-loop attr = mean incoming edge attr
    loop_stats = jnp.dot(s_dst, edge_emb_aug, preferred_element_type=f32)     # [N, H+1]
    counts = loop_stats[:, H:H + 1]                        # from the ones lane (free)
    loop_attr = loop_stats[:, :H] * pl.reciprocal(jnp.maximum(counts, 1.0), approx=False)

    # ---- lin_edge hoisted out of the layer loop (edge_emb / loop_attr are invariant)
    we_all = we_ref[...]                                                      # [H, recep*H]
    ee_all = jnp.dot(edge_emb, we_all, preferred_element_type=f32)            # [E, recep*H]
    ee_loop_all = jnp.dot(loop_attr, we_all, preferred_element_type=f32)      # [N, recep*H]

    ab = attb_ref[...]                       # [2*recep, H]: att rows | conv-bias rows

    all_emb = [node_emb]      # history: [emb0, h_0, h_1, ...]
    blocks = [node_emb]       # H-wide column blocks of the current conv input
    for i in range(recep):
        wlr_i = wlr_ref[i]                        # [recep*H + 1, 2H + 1]
        att = ab[i:i + 1, :]                      # [1, H]  attention vector (heads=1)
        bias = ab[recep + i:recep + i + 1, :]     # [1, H]  conv output bias

        # merged lin_l | lin_r (+ ones output lane): one matmul per history block
        xlr = wlr_i[recep * H:recep * H + 1, :]   # bias row [bl | br | 1], broadcasts
        for k in range(i + 1):
            xlr = xlr + jnp.dot(blocks[k], wlr_i[k * H:(k + 1) * H, :],
                                preferred_element_type=f32)
        xl = xlr[:, :H]                           # lin_l(x)  [N, H]
        xr = xlr[:, H:2 * H]                      # lin_r(x)  [N, H]
        # xlr[:, 2H] == 1 by construction -> carries the softmax denominator for free

        ee = ee_all[:, i * H:(i + 1) * H]          # [E, H]
        ee_loop = ee_loop_all[:, i * H:(i + 1) * H]  # [N, H]

        # gather lin_l(x)[src] / lin_r(x)[dst] via one-hot matmuls (MXU)
        xlr_e = jnp.dot(g_src, xlr, preferred_element_type=f32)   # [E, 2H+1], col 2H == 1
        xl_e = xlr_e[:, :H]
        xr_e = jnp.dot(g_dst, xr, preferred_element_type=f32)     # [E, H]

        # GATv2 logits: att . leaky_relu(x_l[src] + x_r[dst] + lin_edge(e), 0.2)
        m = xl_e + xr_e + ee
        m = jnp.where(m > 0, m, neg_slope * m)
        ml = xl + xr + ee_loop                    # self-loop messages (src == dst == n)
        ml = jnp.where(ml > 0, ml, neg_slope * ml)
        logit_e = lax.dot_general(att, m, (((1,), (1,)), ((), ())),
                                  preferred_element_type=f32)     # [1, E]
        logit_l = jnp.sum(ml * att, axis=-1, keepdims=True)       # [N, 1]

        # per-destination softmax over {incoming edges} U {self loop}; the self loop
        # guarantees denom >= exp(0) = 1, so no 0/0 is possible.
        scores = jnp.where(s_dst > 0, logit_e, big_neg)           # [N, E]
        smax = jnp.maximum(jnp.max(scores, axis=-1, keepdims=True), logit_l)
        p = jnp.exp(scores - smax)            # masked entries underflow to exactly 0
        p_loop = jnp.exp(logit_l - smax)                          # [N, 1]

        # aggregate; the trailing ones lane makes column 2H the softmax denominator
        agg = jnp.dot(p, xlr_e, preferred_element_type=f32) + p_loop * xlr   # [N, 2H+1]
        inv = pl.reciprocal(agg[:, 2 * H:2 * H + 1], approx=False)
        h = jnp.maximum(agg[:, :H] * inv + bias, 0.0)             # [N, H]

        # skip connections: next conv input blocks = [h | sigmoid(skip) * history]
        new_blocks = [h]
        for k in range(i + 1):
            new_blocks.append(all_emb[k] * skip_ref[i, k])        # SMEM scalar gate
        all_emb.append(h)
        blocks = new_blocks

    # final node embedding: one unmasked lane-dense [N, (recep+1)*H] store
    out_ref[...] = jnp.concatenate(blocks, axis=-1)


# ------------------------------- parameters ----------------------------------

def init_params(key, hidden, recep, node_in, edge_in):
    keys = iter(jax.random.split(key, 4 + 6 * recep))

    def glorot(shape):
        fan_in, fan_out = shape
        lim = (6.0 / (fan_in + fan_out)) ** 0.5
        return jax.random.uniform(next(keys), shape, jnp.float32, -lim, lim)

    params = {
        "node_mlp_w": glorot((node_in, hidden)),
        "node_mlp_b": jnp.zeros((hidden,), jnp.float32),
        "edge_mlp_w": glorot((edge_in, hidden)),
        "edge_mlp_b": jnp.zeros((hidden,), jnp.float32),
        "learnable_skip": jnp.ones((recep, recep), jnp.float32),
        "conv": [],
    }
    for i in range(recep):
        cin = hidden * (i + 1)
        params["conv"].append({
            "wl": glorot((cin, hidden)),                  # lin_l weight, [in, out]
            "bl": jnp.zeros((hidden,), jnp.float32),
            "wr": glorot((cin, hidden)),                  # lin_r weight
            "br": jnp.zeros((hidden,), jnp.float32),
            "we": glorot((hidden, hidden)),               # lin_edge (bias-free in PyG)
            "att": glorot((1, hidden)),                   # attention vector (heads=1)
            "bias": jnp.zeros((hidden,), jnp.float32),    # conv output bias
        })
    return params


def pack_params(params, hidden, recep):
    """One-time packing into a few dense blocks (fewer, larger DMAs per forward)."""
    H = hidden
    node_in = params["node_mlp_w"].shape[0]
    edge_in = params["edge_mlp_w"].shape[0]

    nwb = jnp.concatenate([params["node_mlp_w"], params["node_mlp_b"][None, :]], axis=0)

    # edge MLP with an extra output lane (w=0, bias=1) -> edge_emb carries a ones lane
    ewb = jnp.zeros((edge_in + 1, H + 1), jnp.float32)
    ewb = ewb.at[:edge_in, :H].set(params["edge_mlp_w"])
    ewb = ewb.at[edge_in, :H].set(params["edge_mlp_b"])
    ewb = ewb.at[edge_in, H].set(1.0)

    cin_max = recep * H
    wlr = jnp.zeros((recep, cin_max + 1, 2 * H + 1), jnp.float32)  # lin_l|lin_r|ones
    attb = jnp.zeros((2 * recep, H), jnp.float32)                  # att rows | bias rows
    we_blocks = []
    for i, p in enumerate(params["conv"]):
        cin = H * (i + 1)
        wlr = wlr.at[i, :cin, :H].set(p["wl"])
        wlr = wlr.at[i, :cin, H:2 * H].set(p["wr"])
        wlr = wlr.at[i, cin_max, :H].set(p["bl"])      # bias row
        wlr = wlr.at[i, cin_max, H:2 * H].set(p["br"])
        wlr = wlr.at[i, cin_max, 2 * H].set(1.0)       # ones lane -> softmax denom
        attb = attb.at[i].set(p["att"][0])
        attb = attb.at[recep + i].set(p["bias"])
        we_blocks.append(p["we"])
    we_all = jnp.concatenate(we_blocks, axis=1)        # [H, recep*H], lin_edge stacked

    # sigmoid of the skip gates is parameter-only: fold it once at pack time
    skipg = jax.nn.sigmoid(params["learnable_skip"])   # [recep, recep]

    return {"nwb": nwb, "ewb": ewb, "wlr": wlr, "we_all": we_all,
            "attb": attb, "skipg": skipg}


# ------------------------------ forward wrapper -------------------------------

def gat_encoder_forward(packed, node_feat, edge_index, edge_feat, *, hidden, recep):
    n, node_in = node_feat.shape
    e, edge_in = edge_feat.shape
    out_dim = (recep + 1) * hidden

    # Minimal per-call glue: only one transposed copy of the edge index; everything
    # else (biases, ones lanes, masks, gathers, softmax) happens inside ONE pallas_call.
    idx_row = edge_index.astype(jnp.int32)     # [2, E] (src / dst rows)
    idx_col = idx_row.T                        # [E, 2] (src | dst cols)

    vmem = lambda: pl.BlockSpec(memory_space=pltpu.MemorySpace.VMEM)
    smem = lambda: pl.BlockSpec(memory_space=pltpu.MemorySpace.SMEM)

    return pl.pallas_call(
        functools.partial(_gat_encoder_kernel, hidden=hidden, recep=recep,
                          node_in=node_in, edge_in=edge_in),
        out_shape=jax.ShapeDtypeStruct((n, out_dim), jnp.float32),
        in_specs=[
            vmem(),  # node features                         [N, node_in]
            vmem(),  # edge features                         [E, edge_in]
            vmem(),  # edge index, column form               [E, 2] int32
            vmem(),  # edge index, row form                  [2, E] int32
            smem(),  # sigmoid(learnable_skip) scalar gates  [recep, recep]
            vmem(),  # node MLP weight | bias                [node_in+1, H]
            vmem(),  # edge MLP weight | bias | ones lane    [edge_in+1, H+1]
            vmem(),  # merged lin_l|lin_r|ones (+ bias row)  [recep, recep*H+1, 2H+1]
            vmem(),  # stacked lin_edge weights              [H, recep*H]
            vmem(),  # att rows | conv-bias rows             [2*recep, H]
        ],
        out_specs=vmem(),
    )(node_feat.astype(jnp.float32), edge_feat.astype(jnp.float32),
      idx_col, idx_row, packed["skipg"],
      packed["nwb"], packed["ewb"], packed["wlr"], packed["we_all"], packed["attb"])


# ----------------------------------- main -------------------------------------

if __name__ == "__main__":
    HIDDEN, RECEP = 32, 3
    NODE_IN, EDGE_IN = 6, 4
    N_NODES, N_EDGES = 8, 16

    key = jax.random.PRNGKey(0)
    k1, k2, k3, k4, kp = jax.random.split(key, 5)
    node_feat = jax.random.normal(k1, (N_NODES, NODE_IN), jnp.float32)
    edge_feat = jax.random.normal(k2, (N_EDGES, EDGE_IN), jnp.float32)
    src = jax.random.randint(k3, (N_EDGES,), 0, N_NODES, dtype=jnp.int32)
    dst = jax.random.randint(k4, (N_EDGES,), 0, N_NODES, dtype=jnp.int32)
    edge_index = jnp.stack([src, dst])                      # [2, E]

    params = init_params(kp, HIDDEN, RECEP, NODE_IN, EDGE_IN)
    packed = pack_params(params, HIDDEN, RECEP)             # one-time packing

    fwd = jax.jit(functools.partial(gat_encoder_forward, hidden=HIDDEN, recep=RECEP))
    out = jax.block_until_ready(fwd(packed, node_feat, edge_index, edge_feat))

    assert out.shape == (N_NODES, (RECEP + 1) * HIDDEN), out.shape
    assert bool(jnp.all(jnp.isfinite(out)))
    print("KERNEL_OK")
</pallas_src>

<mosaic_0001>
module attributes {stable_mosaic.version = 11 : i64} {
  func.func @_gat_encoder_kernel(%arg0: memref<8x6xf32, #tpu.memory_space<vmem>>, %arg1: memref<16x4xf32, #tpu.memory_space<vmem>>, %arg2: memref<16x2xi32, #tpu.memory_space<vmem>>, %arg3: memref<2x16xi32, #tpu.memory_space<vmem>>, %arg4: memref<3x3xf32, #tpu.memory_space<smem>>, %arg5: memref<7x32xf32, #tpu.memory_space<vmem>>, %arg6: memref<5x33xf32, #tpu.memory_space<vmem>>, %arg7: memref<3x97x65xf32, #tpu.memory_space<vmem>>, %arg8: memref<32x96xf32, #tpu.memory_space<vmem>>, %arg9: memref<6x32xf32, #tpu.memory_space<vmem>>, %arg10: memref<8x128xf32, #tpu.memory_space<vmem>>) attributes {dimension_semantics = [], scalar_prefetch = 0 : i64, scratch_operands = 0 : i64, tpu.core_type = #tpu.core_type<tc>} {
    %c0 = arith.constant 0 : index
    %c0_0 = arith.constant 0 : index
    %0 = vector.load %arg5[%c0, %c0_0] : memref<7x32xf32, #tpu.memory_space<vmem>>, vector<7x32xf32>
    %c0_1 = arith.constant 0 : index
    %c0_2 = arith.constant 0 : index
    %1 = vector.load %arg0[%c0_1, %c0_2] : memref<8x6xf32, #tpu.memory_space<vmem>>, vector<8x6xf32>
    %2 = vector.extract_strided_slice %0 {offsets = [0, 0], sizes = [6, 32], strides = [1, 1]} : vector<7x32xf32> to vector<6x32xf32>
    %cst = arith.constant dense<0.000000e+00> : vector<8x32xf32>
    %3 = tpu.matmul %1, %2, %cst {dimension_numbers = #tpu.dot_dimension_numbers<[1], [0], [0], [1], [0, 0, 1, 1], [], []>} : vector<8x6xf32>, vector<6x32xf32>, vector<8x32xf32> -> vector<8x32xf32>
    %4 = vector.extract_strided_slice %0 {offsets = [6, 0], sizes = [1, 32], strides = [1, 1]} : vector<7x32xf32> to vector<1x32xf32>
    %5 = vector.broadcast %4 : vector<1x32xf32> to vector<8x32xf32>
    %6 = arith.addf %3, %5 : vector<8x32xf32>
    %cst_3 = arith.constant 0.000000e+00 : f32
    %7 = vector.broadcast %cst_3 : f32 to vector<8x32xf32>
    %8 = arith.maximumf %6, %7 : vector<8x32xf32>
    %c0_4 = arith.constant 0 : index
    %c0_5 = arith.constant 0 : index
    %9 = vector.load %arg6[%c0_4, %c0_5] : memref<5x33xf32, #tpu.memory_space<vmem>>, vector<5x33xf32>
    %c0_6 = arith.constant 0 : index
    %c0_7 = arith.constant 0 : index
    %10 = vector.load %arg1[%c0_6, %c0_7] : memref<16x4xf32, #tpu.memory_space<vmem>>, vector<16x4xf32>
    %11 = vector.extract_strided_slice %9 {offsets = [0, 0], sizes = [4, 33], strides = [1, 1]} : vector<5x33xf32> to vector<4x33xf32>
    %cst_8 = arith.constant dense<0.000000e+00> : vector<16x33xf32>
    %12 = tpu.matmul %10, %11, %cst_8 {dimension_numbers = #tpu.dot_dimension_numbers<[1], [0], [0], [1], [0, 0, 1, 1], [], []>} : vector<16x4xf32>, vector<4x33xf32>, vector<16x33xf32> -> vector<16x33xf32>
    %13 = vector.extract_strided_slice %9 {offsets = [4, 0], sizes = [1, 33], strides = [1, 1]} : vector<5x33xf32> to vector<1x33xf32>
    %14 = vector.broadcast %13 : vector<1x33xf32> to vector<16x33xf32>
    %15 = arith.addf %12, %14 : vector<16x33xf32>
    %cst_9 = arith.constant 0.000000e+00 : f32
    %16 = vector.broadcast %cst_9 : f32 to vector<16x33xf32>
    %17 = arith.maximumf %15, %16 : vector<16x33xf32>
    %18 = vector.extract_strided_slice %17 {offsets = [0, 0], sizes = [16, 32], strides = [1, 1]} : vector<16x33xf32> to vector<16x32xf32>
    %c0_10 = arith.constant 0 : index
    %c0_11 = arith.constant 0 : index
    %19 = vector.load %arg2[%c0_10, %c0_11] : memref<16x2xi32, #tpu.memory_space<vmem>>, vector<16x2xi32>
    %c0_12 = arith.constant 0 : index
    %c0_13 = arith.constant 0 : index
    %20 = vector.load %arg3[%c0_12, %c0_13] : memref<2x16xi32, #tpu.memory_space<vmem>>, vector<2x16xi32>
    %21 = tpu.iota {dimensions = array<i32: 1>} : vector<16x8xi32>
    %22 = vector.extract_strided_slice %19 {offsets = [0, 0], sizes = [16, 1], strides = [1, 1]} : vector<16x2xi32> to vector<16x1xi32>
    %23 = vector.broadcast %22 : vector<16x1xi32> to vector<16x8xi32>
    %24 = arith.cmpi eq, %21, %23 : vector<16x8xi32>
    %25 = arith.extui %24 : vector<16x8xi1> to vector<16x8xi32>
    %26 = arith.sitofp %25 : vector<16x8xi32> to vector<16x8xf32>
    %27 = vector.extract_strided_slice %19 {offsets = [0, 1], sizes = [16, 1], strides = [1, 1]} : vector<16x2xi32> to vector<16x1xi32>
    %28 = vector.broadcast %27 : vector<16x1xi32> to vector<16x8xi32>
    %29 = arith.cmpi eq, %21, %28 : vector<16x8xi32>
    %30 = arith.extui %29 : vector<16x8xi1> to vector<16x8xi32>
    %31 = arith.sitofp %30 : vector<16x8xi32> to vector<16x8xf32>
    %32 = tpu.iota {dimensions = array<i32: 0>} : vector<8x16xi32>
    %33 = vector.extract_strided_slice %20 {offsets = [1, 0], sizes = [1, 16], strides = [1, 1]} : vector<2x16xi32> to vector<1x16xi32>
    %34 = vector.broadcast %33 : vector<1x16xi32> to vector<8x16xi32>
    %35 = arith.cmpi eq, %32, %34 : vector<8x16xi32>
    %36 = vector.extract_strided_slice %20 {offsets = [0, 0], sizes = [1, 16], strides = [1, 1]} : vector<2x16xi32> to vector<1x16xi32>
    %37 = vector.extract_strided_slice %20 {offsets = [1, 0], sizes = [1, 16], strides = [1, 1]} : vector<2x16xi32> to vector<1x16xi32>
    %38 = arith.cmpi ne, %36, %37 : vector<1x16xi32>
    %39 = vector.broadcast %38 : vector<1x16xi1> to vector<8x16xi1>
    %40 = arith.andi %35, %39 : vector<8x16xi1>
    %41 = arith.extui %40 : vector<8x16xi1> to vector<8x16xi32>
    %42 = arith.sitofp %41 : vector<8x16xi32> to vector<8x16xf32>
    %cst_14 = arith.constant dense<0.000000e+00> : vector<8x33xf32>
    %43 = tpu.matmul %42, %17, %cst_14 {dimension_numbers = #tpu.dot_dimension_numbers<[1], [0], [0], [1], [0, 0, 1, 1], [], []>} : vector<8x16xf32>, vector<16x33xf32>, vector<8x33xf32> -> vector<8x33xf32>
    %44 = vector.extract_strided_slice %43 {offsets = [0, 32], sizes = [8, 1], strides = [1, 1]} : vector<8x33xf32> to vector<8x1xf32>
    %45 = vector.extract_strided_slice %43 {offsets = [0, 0], sizes = [8, 32], strides = [1, 1]} : vector<8x33xf32> to vector<8x32xf32>
    %cst_15 = arith.constant 1.000000e+00 : f32
    %46 = vector.broadcast %cst_15 : f32 to vector<8x1xf32>
    %47 = arith.maximumf %44, %46 : vector<8x1xf32>
    %48 = tpu.reciprocal %47 : vector<8x1xf32> -> vector<8x1xf32>
    %49 = vector.broadcast %48 : vector<8x1xf32> to vector<8x32xf32>
    %50 = arith.mulf %45, %49 : vector<8x32xf32>
    %c0_16 = arith.constant 0 : index
    %c0_17 = arith.constant 0 : index
    %51 = vector.load %arg8[%c0_16, %c0_17] : memref<32x96xf32, #tpu.memory_space<vmem>>, vector<32x96xf32>
    %cst_18 = arith.constant dense<0.000000e+00> : vector<16x96xf32>
    %52 = tpu.matmul %18, %51, %cst_18 {dimension_numbers = #tpu.dot_dimension_numbers<[1], [0], [0], [1], [0, 0, 1, 1], [], []>} : vector<16x32xf32>, vector<32x96xf32>, vector<16x96xf32> -> vector<16x96xf32>
    %cst_19 = arith.constant dense<0.000000e+00> : vector<8x96xf32>
    %53 = tpu.matmul %50, %51, %cst_19 {dimension_numbers = #tpu.dot_dimension_numbers<[1], [0], [0], [1], [0, 0, 1, 1], [], []>} : vector<8x32xf32>, vector<32x96xf32>, vector<8x96xf32> -> vector<8x96xf32>
    %c0_20 = arith.constant 0 : index
    %c0_21 = arith.constant 0 : index
    %54 = vector.load %arg9[%c0_20, %c0_21] : memref<6x32xf32, #tpu.memory_space<vmem>>, vector<6x32xf32>
    %c0_22 = arith.constant 0 : index
    %c0_23 = arith.constant 0 : index
    %c0_24 = arith.constant 0 : index
    %55 = vector.load %arg7[%c0_22, %c0_23, %c0_24] : memref<3x97x65xf32, #tpu.memory_space<vmem>>, vector<1x97x65xf32>
    %56 = vector.shape_cast %55 : vector<1x97x65xf32> to vector<97x65xf32>
    %57 = vector.extract_strided_slice %54 {offsets = [0, 0], sizes = [1, 32], strides = [1, 1]} : vector<6x32xf32> to vector<1x32xf32>
    %58 = vector.extract_strided_slice %54 {offsets = [3, 0], sizes = [1, 32], strides = [1, 1]} : vector<6x32xf32> to vector<1x32xf32>
    %59 = vector.extract_strided_slice %56 {offsets = [96, 0], sizes = [1, 65], strides = [1, 1]} : vector<97x65xf32> to vector<1x65xf32>
    %60 = vector.extract_strided_slice %56 {offsets = [0, 0], sizes = [32, 65], strides = [1, 1]} : vector<97x65xf32> to vector<32x65xf32>
    %cst_25 = arith.constant dense<0.000000e+00> : vector<8x65xf32>
    %61 = tpu.matmul %8, %60, %cst_25 {dimension_numbers = #tpu.dot_dimension_numbers<[1], [0], [0], [1], [0, 0, 1, 1], [], []>} : vector<8x32xf32>, vector<32x65xf32>, vector<8x65xf32> -> vector<8x65xf32>
    %62 = vector.broadcast %59 : vector<1x65xf32> to vector<8x65xf32>
    %63 = arith.addf %62, %61 : vector<8x65xf32>
    %64 = vector.extract_strided_slice %63 {offsets = [0, 0], sizes = [8, 32], strides = [1, 1]} : vector<8x65xf32> to vector<8x32xf32>
    %65 = vector.extract_strided_slice %63 {offsets = [0, 32], sizes = [8, 32], strides = [1, 1]} : vector<8x65xf32> to vector<8x32xf32>
    %66 = vector.extract_strided_slice %52 {offsets = [0, 0], sizes = [16, 32], strides = [1, 1]} : vector<16x96xf32> to vector<16x32xf32>
    %67 = vector.extract_strided_slice %53 {offsets = [0, 0], sizes = [8, 32], strides = [1, 1]} : vector<8x96xf32> to vector<8x32xf32>
    %cst_26 = arith.constant dense<0.000000e+00> : vector<16x65xf32>
    %68 = tpu.matmul %26, %63, %cst_26 {dimension_numbers = #tpu.dot_dimension_numbers<[1], [0], [0], [1], [0, 0, 1, 1], [], []>} : vector<16x8xf32>, vector<8x65xf32>, vector<16x65xf32> -> vector<16x65xf32>
    %69 = vector.extract_strided_slice %68 {offsets = [0, 0], sizes = [16, 32], strides = [1, 1]} : vector<16x65xf32> to vector<16x32xf32>
    %cst_27 = arith.constant dense<0.000000e+00> : vector<16x32xf32>
    %70 = tpu.matmul %31, %65, %cst_27 {dimension_numbers = #tpu.dot_dimension_numbers<[1], [0], [0], [1], [0, 0, 1, 1], [], []>} : vector<16x8xf32>, vector<8x32xf32>, vector<16x32xf32> -> vector<16x32xf32>
    %71 = arith.addf %69, %70 : vector<16x32xf32>
    %72 = arith.addf %71, %66 : vector<16x32xf32>
    %cst_28 = arith.constant 0.000000e+00 : f32
    %73 = vector.broadcast %cst_28 : f32 to vector<16x32xf32>
    %74 = arith.cmpf ogt, %72, %73 : vector<16x32xf32>
    %cst_29 = arith.constant 2.000000e-01 : f32
    %75 = vector.broadcast %cst_29 : f32 to vector<16x32xf32>
    %76 = arith.mulf %75, %72 : vector<16x32xf32>
    %77 = arith.select %74, %72, %76 : vector<16x32xi1>, vector<16x32xf32>
    %78 = arith.addf %64, %65 : vector<8x32xf32>
    %79 = arith.addf %78, %67 : vector<8x32xf32>
    %cst_30 = arith.constant 0.000000e+00 : f32
    %80 = vector.broadcast %cst_30 : f32 to vector<8x32xf32>
    %81 = arith.cmpf ogt, %79, %80 : vector<8x32xf32>
    %cst_31 = arith.constant 2.000000e-01 : f32
    %82 = vector.broadcast %cst_31 : f32 to vector<8x32xf32>
    %83 = arith.mulf %82, %79 : vector<8x32xf32>
    %84 = arith.select %81, %79, %83 : vector<8x32xi1>, vector<8x32xf32>
    %cst_32 = arith.constant dense<0.000000e+00> : vector<1x16xf32>
    %85 = tpu.matmul %57, %77, %cst_32 {dimension_numbers = #tpu.dot_dimension_numbers<[1], [1], [0], [0], [0, 0, 1, 0], [], []>} : vector<1x32xf32>, vector<16x32xf32>, vector<1x16xf32> -> vector<1x16xf32>
    %86 = vector.broadcast %57 : vector<1x32xf32> to vector<8x32xf32>
    %87 = arith.mulf %84, %86 : vector<8x32xf32>
    %cst_33 = arith.constant dense<0.000000e+00> : vector<8xf32>
    %88 = vector.multi_reduction <add>, %87, %cst_33 [1] : vector<8x32xf32> to vector<8xf32>
    %89 = vector.shape_cast %88 : vector<8xf32> to vector<8x1xf32>
    %cst_34 = arith.constant 0.000000e+00 : f32
    %90 = vector.broadcast %cst_34 : f32 to vector<8x16xf32>
    %91 = arith.cmpf ogt, %42, %90 : vector<8x16xf32>
    %cst_35 = arith.constant -1.000000e+30 : f32
    %92 = vector.shape_cast %85 : vector<1x16xf32> to vector<1x16xf32>
    %93 = vector.broadcast %92 : vector<1x16xf32> to vector<8x16xf32>
    %94 = vector.broadcast %cst_35 : f32 to vector<8x16xf32>
    %95 = arith.select %91, %93, %94 : vector<8x16xi1>, vector<8x16xf32>
    %cst_36 = arith.constant dense<0xFF800000> : vector<8xf32>
    %96 = vector.multi_reduction <maximumf>, %95, %cst_36 [1] : vector<8x16xf32> to vector<8xf32>
    %97 = vector.shape_cast %96 : vector<8xf32> to vector<8x1xf32>
    %98 = arith.maximumf %97, %89 : vector<8x1xf32>
    %99 = vector.broadcast %98 : vector<8x1xf32> to vector<8x16xf32>
    %100 = arith.subf %95, %99 : vector<8x16xf32>
    %101 = math.exp %100 : vector<8x16xf32>
    %102 = arith.subf %89, %98 : vector<8x1xf32>
    %103 = math.exp %102 : vector<8x1xf32>
    %cst_37 = arith.constant dense<0.000000e+00> : vector<8x65xf32>
    %104 = tpu.matmul %101, %68, %cst_37 {dimension_numbers = #tpu.dot_dimension_numbers<[1], [0], [0], [1], [0, 0, 1, 1], [], []>} : vector<8x16xf32>, vector<16x65xf32>, vector<8x65xf32> -> vector<8x65xf32>
    %105 = vector.broadcast %103 : vector<8x1xf32> to vector<8x65xf32>
    %106 = arith.mulf %105, %63 : vector<8x65xf32>
    %107 = arith.addf %104, %106 : vector<8x65xf32>
    %108 = vector.extract_strided_slice %107 {offsets = [0, 64], sizes = [8, 1], strides = [1, 1]} : vector<8x65xf32> to vector<8x1xf32>
    %109 = tpu.reciprocal %108 : vector<8x1xf32> -> vector<8x1xf32>
    %110 = vector.extract_strided_slice %107 {offsets = [0, 0], sizes = [8, 32], strides = [1, 1]} : vector<8x65xf32> to vector<8x32xf32>
    %111 = vector.broadcast %109 : vector<8x1xf32> to vector<8x32xf32>
    %112 = arith.mulf %110, %111 : vector<8x32xf32>
    %113 = vector.broadcast %58 : vector<1x32xf32> to vector<8x32xf32>
    %114 = arith.addf %112, %113 : vector<8x32xf32>
    %cst_38 = arith.constant 0.000000e+00 : f32
    %115 = vector.broadcast %cst_38 : f32 to vector<8x32xf32>
    %116 = arith.maximumf %114, %115 : vector<8x32xf32>
    %c0_39 = arith.constant 0 : index
    %c0_40 = arith.constant 0 : index
    %117 = memref.load %arg4[%c0_39, %c0_40] : memref<3x3xf32, #tpu.memory_space<smem>>
    %118 = vector.broadcast %117 : f32 to vector<8x32xf32>
    %119 = arith.mulf %8, %118 : vector<8x32xf32>
    %c1 = arith.constant 1 : index
    %c0_41 = arith.constant 0 : index
    %c0_42 = arith.constant 0 : index
    %120 = vector.load %arg7[%c1, %c0_41, %c0_42] : memref<3x97x65xf32, #tpu.memory_space<vmem>>, vector<1x97x65xf32>
    %121 = vector.shape_cast %120 : vector<1x97x65xf32> to vector<97x65xf32>
    %122 = vector.extract_strided_slice %54 {offsets = [1, 0], sizes = [1, 32], strides = [1, 1]} : vector<6x32xf32> to vector<1x32xf32>
    %123 = vector.extract_strided_slice %54 {offsets = [4, 0], sizes = [1, 32], strides = [1, 1]} : vector<6x32xf32> to vector<1x32xf32>
    %124 = vector.extract_strided_slice %121 {offsets = [96, 0], sizes = [1, 65], strides = [1, 1]} : vector<97x65xf32> to vector<1x65xf32>
    %125 = vector.extract_strided_slice %121 {offsets = [0, 0], sizes = [32, 65], strides = [1, 1]} : vector<97x65xf32> to vector<32x65xf32>
    %cst_43 = arith.constant dense<0.000000e+00> : vector<8x65xf32>
    %126 = tpu.matmul %116, %125, %cst_43 {dimension_numbers = #tpu.dot_dimension_numbers<[1], [0], [0], [1], [0, 0, 1, 1], [], []>} : vector<8x32xf32>, vector<32x65xf32>, vector<8x65xf32> -> vector<8x65xf32>
    %127 = vector.broadcast %124 : vector<1x65xf32> to vector<8x65xf32>
    %128 = arith.addf %127, %126 : vector<8x65xf32>
    %129 = vector.extract_strided_slice %121 {offsets = [32, 0], sizes = [32, 65], strides = [1, 1]} : vector<97x65xf32> to vector<32x65xf32>
    %cst_44 = arith.constant dense<0.000000e+00> : vector<8x65xf32>
    %130 = tpu.matmul %119, %129, %cst_44 {dimension_numbers = #tpu.dot_dimension_numbers<[1], [0], [0], [1], [0, 0, 1, 1], [], []>} : vector<8x32xf32>, vector<32x65xf32>, vector<8x65xf32> -> vector<8x65xf32>
    %131 = arith.addf %128, %130 : vector<8x65xf32>
    %132 = vector.extract_strided_slice %131 {offsets = [0, 0], sizes = [8, 32], strides = [1, 1]} : vector<8x65xf32> to vector<8x32xf32>
    %133 = vector.extract_strided_slice %131 {offsets = [0, 32], sizes = [8, 32], strides = [1, 1]} : vector<8x65xf32> to vector<8x32xf32>
    %134 = vector.extract_strided_slice %52 {offsets = [0, 32], sizes = [16, 32], strides = [1, 1]} : vector<16x96xf32> to vector<16x32xf32>
    %135 = vector.extract_strided_slice %53 {offsets = [0, 32], sizes = [8, 32], strides = [1, 1]} : vector<8x96xf32> to vector<8x32xf32>
    %cst_45 = arith.constant dense<0.000000e+00> : vector<16x65xf32>
    %136 = tpu.matmul %26, %131, %cst_45 {dimension_numbers = #tpu.dot_dimension_numbers<[1], [0], [0], [1], [0, 0, 1, 1], [], []>} : vector<16x8xf32>, vector<8x65xf32>, vector<16x65xf32> -> vector<16x65xf32>
    %137 = vector.extract_strided_slice %136 {offsets = [0, 0], sizes = [16, 32], strides = [1, 1]} : vector<16x65xf32> to vector<16x32xf32>
    %cst_46 = arith.constant dense<0.000000e+00> : vector<16x32xf32>
    %138 = tpu.matmul %31, %133, %cst_46 {dimension_numbers = #tpu.dot_dimension_numbers<[1], [0], [0], [1], [0, 0, 1, 1], [], []>} : vector<16x8xf32>, vector<8x32xf32>, vector<16x32xf32> -> vector<16x32xf32>
    %139 = arith.addf %137, %138 : vector<16x32xf32>
    %140 = arith.addf %139, %134 : vector<16x32xf32>
    %cst_47 = arith.constant 0.000000e+00 : f32
    %141 = vector.broadcast %cst_47 : f32 to vector<16x32xf32>
    %142 = arith.cmpf ogt, %140, %141 : vector<16x32xf32>
    %cst_48 = arith.constant 2.000000e-01 : f32
    %143 = vector.broadcast %cst_48 : f32 to vector<16x32xf32>
    %144 = arith.mulf %143, %140 : vector<16x32xf32>
    %145 = arith.select %142, %140, %144 : vector<16x32xi1>, vector<16x32xf32>
    %146 = arith.addf %132, %133 : vector<8x32xf32>
    %147 = arith.addf %146, %135 : vector<8x32xf32>
    %cst_49 = arith.constant 0.000000e+00 : f32
    %148 = vector.broadcast %cst_49 : f32 to vector<8x32xf32>
    %149 = arith.cmpf ogt, %147, %148 : vector<8x32xf32>
    %cst_50 = arith.constant 2.000000e-01 : f32
    %150 = vector.broadcast %cst_50 : f32 to vector<8x32xf32>
    %151 = arith.mulf %150, %147 : vector<8x32xf32>
    %152 = arith.select %149, %147, %151 : vector<8x32xi1>, vector<8x32xf32>
    %cst_51 = arith.constant dense<0.000000e+00> : vector<1x16xf32>
    %153 = tpu.matmul %122, %145, %cst_51 {dimension_numbers = #tpu.dot_dimension_numbers<[1], [1], [0], [0], [0, 0, 1, 0], [], []>} : vector<1x32xf32>, vector<16x32xf32>, vector<1x16xf32> -> vector<1x16xf32>
    %154 = vector.broadcast %122 : vector<1x32xf32> to vector<8x32xf32>
    %155 = arith.mulf %152, %154 : vector<8x32xf32>
    %cst_52 = arith.constant dense<0.000000e+00> : vector<8xf32>
    %156 = vector.multi_reduction <add>, %155, %cst_52 [1] : vector<8x32xf32> to vector<8xf32>
    %157 = vector.shape_cast %156 : vector<8xf32> to vector<8x1xf32>
    %cst_53 = arith.constant 0.000000e+00 : f32
    %158 = vector.broadcast %cst_53 : f32 to vector<8x16xf32>
    %159 = arith.cmpf ogt, %42, %158 : vector<8x16xf32>
    %cst_54 = arith.constant -1.000000e+30 : f32
    %160 = vector.shape_cast %153 : vector<1x16xf32> to vector<1x16xf32>
    %161 = vector.broadcast %160 : vector<1x16xf32> to vector<8x16xf32>
    %162 = vector.broadcast %cst_54 : f32 to vector<8x16xf32>
    %163 = arith.select %159, %161, %162 : vector<8x16xi1>, vector<8x16xf32>
    %cst_55 = arith.constant dense<0xFF800000> : vector<8xf32>
    %164 = vector.multi_reduction <maximumf>, %163, %cst_55 [1] : vector<8x16xf32> to vector<8xf32>
    %165 = vector.shape_cast %164 : vector<8xf32> to vector<8x1xf32>
    %166 = arith.maximumf %165, %157 : vector<8x1xf32>
    %167 = vector.broadcast %166 : vector<8x1xf32> to vector<8x16xf32>
    %168 = arith.subf %163, %167 : vector<8x16xf32>
    %169 = math.exp %168 : vector<8x16xf32>
    %170 = arith.subf %157, %166 : vector<8x1xf32>
    %171 = math.exp %170 : vector<8x1xf32>
    %cst_56 = arith.constant dense<0.000000e+00> : vector<8x65xf32>
    %172 = tpu.matmul %169, %136, %cst_56 {dimension_numbers = #tpu.dot_dimension_numbers<[1], [0], [0], [1], [0, 0, 1, 1], [], []>} : vector<8x16xf32>, vector<16x65xf32>, vector<8x65xf32> -> vector<8x65xf32>
    %173 = vector.broadcast %171 : vector<8x1xf32> to vector<8x65xf32>
    %174 = arith.mulf %173, %131 : vector<8x65xf32>
    %175 = arith.addf %172, %174 : vector<8x65xf32>
    %176 = vector.extract_strided_slice %175 {offsets = [0, 64], sizes = [8, 1], strides = [1, 1]} : vector<8x65xf32> to vector<8x1xf32>
    %177 = tpu.reciprocal %176 : vector<8x1xf32> -> vector<8x1xf32>
    %178 = vector.extract_strided_slice %175 {offsets = [0, 0], sizes = [8, 32], strides = [1, 1]} : vector<8x65xf32> to vector<8x32xf32>
    %179 = vector.broadcast %177 : vector<8x1xf32> to vector<8x32xf32>
    %180 = arith.mulf %178, %179 : vector<8x32xf32>
    %181 = vector.broadcast %123 : vector<1x32xf32> to vector<8x32xf32>
    %182 = arith.addf %180, %181 : vector<8x32xf32>
    %cst_57 = arith.constant 0.000000e+00 : f32
    %183 = vector.broadcast %cst_57 : f32 to vector<8x32xf32>
    %184 = arith.maximumf %182, %183 : vector<8x32xf32>
    %c1_58 = arith.constant 1 : index
    %c0_59 = arith.constant 0 : index
    %185 = memref.load %arg4[%c1_58, %c0_59] : memref<3x3xf32, #tpu.memory_space<smem>>
    %186 = vector.broadcast %185 : f32 to vector<8x32xf32>
    %187 = arith.mulf %8, %186 : vector<8x32xf32>
    %c1_60 = arith.constant 1 : index
    %c1_61 = arith.constant 1 : index
    %188 = memref.load %arg4[%c1_60, %c1_61] : memref<3x3xf32, #tpu.memory_space<smem>>
    %189 = vector.broadcast %188 : f32 to vector<8x32xf32>
    %190 = arith.mulf %116, %189 : vector<8x32xf32>
    %c2 = arith.constant 2 : index
    %c0_62 = arith.constant 0 : index
    %c0_63 = arith.constant 0 : index
    %191 = vector.load %arg7[%c2, %c0_62, %c0_63] : memref<3x97x65xf32, #tpu.memory_space<vmem>>, vector<1x97x65xf32>
    %192 = vector.shape_cast %191 : vector<1x97x65xf32> to vector<97x65xf32>
    %193 = vector.extract_strided_slice %54 {offsets = [2, 0], sizes = [1, 32], strides = [1, 1]} : vector<6x32xf32> to vector<1x32xf32>
    %194 = vector.extract_strided_slice %54 {offsets = [5, 0], sizes = [1, 32], strides = [1, 1]} : vector<6x32xf32> to vector<1x32xf32>
    %195 = vector.extract_strided_slice %192 {offsets = [96, 0], sizes = [1, 65], strides = [1, 1]} : vector<97x65xf32> to vector<1x65xf32>
    %196 = vector.extract_strided_slice %192 {offsets = [0, 0], sizes = [32, 65], strides = [1, 1]} : vector<97x65xf32> to vector<32x65xf32>
    %cst_64 = arith.constant dense<0.000000e+00> : vector<8x65xf32>
    %197 = tpu.matmul %184, %196, %cst_64 {dimension_numbers = #tpu.dot_dimension_numbers<[1], [0], [0], [1], [0, 0, 1, 1], [], []>} : vector<8x32xf32>, vector<32x65xf32>, vector<8x65xf32> -> vector<8x65xf32>
    %198 = vector.broadcast %195 : vector<1x65xf32> to vector<8x65xf32>
    %199 = arith.addf %198, %197 : vector<8x65xf32>
    %200 = vector.extract_strided_slice %192 {offsets = [32, 0], sizes = [32, 65], strides = [1, 1]} : vector<97x65xf32> to vector<32x65xf32>
    %cst_65 = arith.constant dense<0.000000e+00> : vector<8x65xf32>
    %201 = tpu.matmul %187, %200, %cst_65 {dimension_numbers = #tpu.dot_dimension_numbers<[1], [0], [0], [1], [0, 0, 1, 1], [], []>} : vector<8x32xf32>, vector<32x65xf32>, vector<8x65xf32> -> vector<8x65xf32>
    %202 = arith.addf %199, %201 : vector<8x65xf32>
    %203 = vector.extract_strided_slice %192 {offsets = [64, 0], sizes = [32, 65], strides = [1, 1]} : vector<97x65xf32> to vector<32x65xf32>
    %cst_66 = arith.constant dense<0.000000e+00> : vector<8x65xf32>
    %204 = tpu.matmul %190, %203, %cst_66 {dimension_numbers = #tpu.dot_dimension_numbers<[1], [0], [0], [1], [0, 0, 1, 1], [], []>} : vector<8x32xf32>, vector<32x65xf32>, vector<8x65xf32> -> vector<8x65xf32>
    %205 = arith.addf %202, %204 : vector<8x65xf32>
    %206 = vector.extract_strided_slice %205 {offsets = [0, 0], sizes = [8, 32], strides = [1, 1]} : vector<8x65xf32> to vector<8x32xf32>
    %207 = vector.extract_strided_slice %205 {offsets = [0, 32], sizes = [8, 32], strides = [1, 1]} : vector<8x65xf32> to vector<8x32xf32>
    %208 = vector.extract_strided_slice %52 {offsets = [0, 64], sizes = [16, 32], strides = [1, 1]} : vector<16x96xf32> to vector<16x32xf32>
    %209 = vector.extract_strided_slice %53 {offsets = [0, 64], sizes = [8, 32], strides = [1, 1]} : vector<8x96xf32> to vector<8x32xf32>
    %cst_67 = arith.constant dense<0.000000e+00> : vector<16x65xf32>
    %210 = tpu.matmul %26, %205, %cst_67 {dimension_numbers = #tpu.dot_dimension_numbers<[1], [0], [0], [1], [0, 0, 1, 1], [], []>} : vector<16x8xf32>, vector<8x65xf32>, vector<16x65xf32> -> vector<16x65xf32>
    %211 = vector.extract_strided_slice %210 {offsets = [0, 0], sizes = [16, 32], strides = [1, 1]} : vector<16x65xf32> to vector<16x32xf32>
    %cst_68 = arith.constant dense<0.000000e+00> : vector<16x32xf32>
    %212 = tpu.matmul %31, %207, %cst_68 {dimension_numbers = #tpu.dot_dimension_numbers<[1], [0], [0], [1], [0, 0, 1, 1], [], []>} : vector<16x8xf32>, vector<8x32xf32>, vector<16x32xf32> -> vector<16x32xf32>
    %213 = arith.addf %211, %212 : vector<16x32xf32>
    %214 = arith.addf %213, %208 : vector<16x32xf32>
    %cst_69 = arith.constant 0.000000e+00 : f32
    %215 = vector.broadcast %cst_69 : f32 to vector<16x32xf32>
    %216 = arith.cmpf ogt, %214, %215 : vector<16x32xf32>
    %cst_70 = arith.constant 2.000000e-01 : f32
    %217 = vector.broadcast %cst_70 : f32 to vector<16x32xf32>
    %218 = arith.mulf %217, %214 : vector<16x32xf32>
    %219 = arith.select %216, %214, %218 : vector<16x32xi1>, vector<16x32xf32>
    %220 = arith.addf %206, %207 : vector<8x32xf32>
    %221 = arith.addf %220, %209 : vector<8x32xf32>
    %cst_71 = arith.constant 0.000000e+00 : f32
    %222 = vector.broadcast %cst_71 : f32 to vector<8x32xf32>
    %223 = arith.cmpf ogt, %221, %222 : vector<8x32xf32>
    %cst_72 = arith.constant 2.000000e-01 : f32
    %224 = vector.broadcast %cst_72 : f32 to vector<8x32xf32>
    %225 = arith.mulf %224, %221 : vector<8x32xf32>
    %226 = arith.select %223, %221, %225 : vector<8x32xi1>, vector<8x32xf32>
    %cst_73 = arith.constant dense<0.000000e+00> : vector<1x16xf32>
    %227 = tpu.matmul %193, %219, %cst_73 {dimension_numbers = #tpu.dot_dimension_numbers<[1], [1], [0], [0], [0, 0, 1, 0], [], []>} : vector<1x32xf32>, vector<16x32xf32>, vector<1x16xf32> -> vector<1x16xf32>
    %228 = vector.broadcast %193 : vector<1x32xf32> to vector<8x32xf32>
    %229 = arith.mulf %226, %228 : vector<8x32xf32>
    %cst_74 = arith.constant dense<0.000000e+00> : vector<8xf32>
    %230 = vector.multi_reduction <add>, %229, %cst_74 [1] : vector<8x32xf32> to vector<8xf32>
    %231 = vector.shape_cast %230 : vector<8xf32> to vector<8x1xf32>
    %cst_75 = arith.constant 0.000000e+00 : f32
    %232 = vector.broadcast %cst_75 : f32 to vector<8x16xf32>
    %233 = arith.cmpf ogt, %42, %232 : vector<8x16xf32>
    %cst_76 = arith.constant -1.000000e+30 : f32
    %234 = vector.shape_cast %227 : vector<1x16xf32> to vector<1x16xf32>
    %235 = vector.broadcast %234 : vector<1x16xf32> to vector<8x16xf32>
    %236 = vector.broadcast %cst_76 : f32 to vector<8x16xf32>
    %237 = arith.select %233, %235, %236 : vector<8x16xi1>, vector<8x16xf32>
    %cst_77 = arith.constant dense<0xFF800000> : vector<8xf32>
    %238 = vector.multi_reduction <maximumf>, %237, %cst_77 [1] : vector<8x16xf32> to vector<8xf32>
    %239 = vector.shape_cast %238 : vector<8xf32> to vector<8x1xf32>
    %240 = arith.maximumf %239, %231 : vector<8x1xf32>
    %241 = vector.broadcast %240 : vector<8x1xf32> to vector<8x16xf32>
    %242 = arith.subf %237, %241 : vector<8x16xf32>
    %243 = math.exp %242 : vector<8x16xf32>
    %244 = arith.subf %231, %240 : vector<8x1xf32>
    %245 = math.exp %244 : vector<8x1xf32>
    %cst_78 = arith.constant dense<0.000000e+00> : vector<8x65xf32>
    %246 = tpu.matmul %243, %210, %cst_78 {dimension_numbers = #tpu.dot_dimension_numbers<[1], [0], [0], [1], [0, 0, 1, 1], [], []>} : vector<8x16xf32>, vector<16x65xf32>, vector<8x65xf32> -> vector<8x65xf32>
    %247 = vector.broadcast %245 : vector<8x1xf32> to vector<8x65xf32>
    %248 = arith.mulf %247, %205 : vector<8x65xf32>
    %249 = arith.addf %246, %248 : vector<8x65xf32>
    %250 = vector.extract_strided_slice %249 {offsets = [0, 64], sizes = [8, 1], strides = [1, 1]} : vector<8x65xf32> to vector<8x1xf32>
    %251 = tpu.reciprocal %250 : vector<8x1xf32> -> vector<8x1xf32>
    %252 = vector.extract_strided_slice %249 {offsets = [0, 0], sizes = [8, 32], strides = [1, 1]} : vector<8x65xf32> to vector<8x32xf32>
    %253 = vector.broadcast %251 : vector<8x1xf32> to vector<8x32xf32>
    %254 = arith.mulf %252, %253 : vector<8x32xf32>
    %255 = vector.broadcast %194 : vector<1x32xf32> to vector<8x32xf32>
    %256 = arith.addf %254, %255 : vector<8x32xf32>
    %cst_79 = arith.constant 0.000000e+00 : f32
    %257 = vector.broadcast %cst_79 : f32 to vector<8x32xf32>
    %258 = arith.maximumf %256, %257 : vector<8x32xf32>
    %c2_80 = arith.constant 2 : index
    %c0_81 = arith.constant 0 : index
    %259 = memref.load %arg4[%c2_80, %c0_81] : memref<3x3xf32, #tpu.memory_space<smem>>
    %260 = vector.broadcast %259 : f32 to vector<8x32xf32>
    %261 = arith.mulf %8, %260 : vector<8x32xf32>
    %c2_82 = arith.constant 2 : index
    %c1_83 = arith.constant 1 : index
    %262 = memref.load %arg4[%c2_82, %c1_83] : memref<3x3xf32, #tpu.memory_space<smem>>
    %263 = vector.broadcast %262 : f32 to vector<8x32xf32>
    %264 = arith.mulf %116, %263 : vector<8x32xf32>
    %c2_84 = arith.constant 2 : index
    %c2_85 = arith.constant 2 : index
    %265 = memref.load %arg4[%c2_84, %c2_85] : memref<3x3xf32, #tpu.memory_space<smem>>
    %266 = vector.broadcast %265 : f32 to vector<8x32xf32>
    %267 = arith.mulf %184, %266 : vector<8x32xf32>
    %268 = tpu.concatenate %258, %261, %264, %267 in 1 : vector<8x32xf32>, vector<8x32xf32>, vector<8x32xf32>, vector<8x32xf32> -> vector<8x128xf32>
    %c0_86 = arith.constant 0 : index
    %c0_87 = arith.constant 0 : index
    %269 = vector.load %arg10[%c0_86, %c0_87] : memref<8x128xf32, #tpu.memory_space<vmem>>, vector<8x128xf32>
    tpu.vector_store %arg10[%c0_86, %c0_87], %268 {strides = array<i32>} : memref<8x128xf32, #tpu.memory_space<vmem>>, vector<8x128xf32>,
    return
  }
}

</mosaic_0001>

<llo_original>
// kernel: gat_encoder_forward.1
$region0: #{gat_encoder_forward.1}
  #allocation0 [shape = 'u32[]', space=smem, size = 0x4, offset = 0x4, fixed_abs, tag = 'smem constant byte address 0x4 - core index']
  #allocation1 [shape = 'u32[72,128]{1,0:T(1,128)}', space=vmem, size = 0x9000, scoped, tag = 'internal scratch']
  %s0 = inlined_call_operand.vmem [shape: f32[8,6], index: 0, kind: input, shape index: {}]
  %s1 = inlined_call_operand.vmem [shape: f32[16,4], index: 1, kind: input, shape index: {}]
  %s2 = inlined_call_operand.vmem [shape: s32[16,2], index: 2, kind: input, shape index: {}]
  %s3 = inlined_call_operand.vmem [shape: s32[2,16], index: 3, kind: input, shape index: {}]
  %s4 = inlined_call_operand.vmem [shape: f32[3,3], index: 4, kind: input, shape index: {}]
  %s5 = inlined_call_operand.vmem [shape: f32[7,32], index: 5, kind: input, shape index: {}]
  %s6 = inlined_call_operand.vmem [shape: f32[5,33], index: 6, kind: input, shape index: {}]
  %s7 = inlined_call_operand.vmem [shape: f32[3,97,65], index: 7, kind: input, shape index: {}]
  %s8 = inlined_call_operand.vmem [shape: f32[32,96], index: 8, kind: input, shape index: {}]
  %s9 = inlined_call_operand.vmem [shape: f32[6,32], index: 9, kind: input, shape index: {}]
  %s10 = inlined_call_operand.hbm [shape: f32[8,128], index: 10, kind: output, shape index: {}]
  %s11 = sld [smem:[#allocation0]]
  $region54: #{gat_encoder_forward.1} parent=0
    _
  %s13 = ssub.s32 1, %s11
  %s14 = scalar_select 0, %s13, %s11
  $region1: #{gat_encoder_forward.1} parent=0
    #allocation2 [shape = 'u8[2048]{0}', space=smem, size = 0x800, scoped, tag = 'input window, operand 4, single buffered']
    #allocation3 [shape = 's32[1]{0}', space=sflag, size = 0x4, scoped, tag = 'scoped memory for gat_encoder_forward.1']
    #allocation4 [shape = 's32[1]{0}', space=sflag, size = 0x4, scoped, tag = 'scoped memory for gat_encoder_forward.1']
    #allocation5 [shape = 'u8[4096]{0}', space=vmem, size = 0x1000, scoped, tag = 'output window, operand 0, single buffered']
    %15 = vsyncpa [#allocation4], 0
    %16 = vsyncpa [#allocation3], 0
    // Predicated region
    $region2: #{gat_encoder_forward.1} parent=1 // pred_check
      _
    $region3: #{gat_encoder_forward.1} parent=1 // pred_check_branch
      %18 = sbr.rel (0) target = $region5
    $region4: #{gat_encoder_forward.1} parent=1 // pred_region
      _
    $region5: #{gat_encoder_forward.1} parent=1 // pred_fallthru
      _
    // Predicated region
    $region6: #{gat_encoder_forward.1} parent=1 // pred_check
      _
    $region7: #{gat_encoder_forward.1} parent=1 // pred_check_branch
      %20 = sbr.rel (0) target = $region9
    $region8: #{gat_encoder_forward.1} parent=1 // pred_region
      _
    $region9: #{gat_encoder_forward.1} parent=1 // pred_fallthru
      _
    // Predicated region
    $region10: #{gat_encoder_forward.1} parent=1 // pred_check
      _
    $region11: #{gat_encoder_forward.1} parent=1 // pred_check_branch
      %22 = sbr.rel (0) target = $region13
    $region12: #{gat_encoder_forward.1} parent=1 // pred_region
      _
    $region13: #{gat_encoder_forward.1} parent=1 // pred_fallthru
      _
    // Predicated region
    $region14: #{gat_encoder_forward.1} parent=1 // pred_check
      _
    $region15: #{gat_encoder_forward.1} parent=1 // pred_check_branch
      %24 = sbr.rel (0) target = $region17
    $region16: #{gat_encoder_forward.1} parent=1 // pred_region
      _
    $region17: #{gat_encoder_forward.1} parent=1 // pred_fallthru
      _
    // Predicated region
    $region18: #{gat_encoder_forward.1} parent=1 // pred_check
      _
    $region19: #{gat_encoder_forward.1} parent=1 // pred_check_branch
      %26 = sbr.rel (0) target = $region21
    $region20: #{gat_encoder_forward.1} parent=1 // pred_region
      %28 = vsyncadd [#allocation4], 0
      %s30 = sshll.u32 %s4, 4
      %s31 = int_to_ptr.vmem [resolvable:$true] %s30
      %33 = dma.vmem_to_smem %s31, 64, [#allocation2], [#allocation4]
    $region21: #{gat_encoder_forward.1} parent=1 // pred_fallthru
      _
    // Predicated region
    $region22: #{gat_encoder_forward.1} parent=1 // pred_check
      _
    $region23: #{gat_encoder_forward.1} parent=1 // pred_check_branch
      %35 = sbr.rel (0) target = $region25
    $region24: #{gat_encoder_forward.1} parent=1 // pred_region
      _
    $region25: #{gat_encoder_forward.1} parent=1 // pred_fallthru
      _
    // Predicated region
    $region26: #{gat_encoder_forward.1} parent=1 // pred_check
      _
    $region27: #{gat_encoder_forward.1} parent=1 // pred_check_branch
      %37 = sbr.rel (0) target = $region29
    $region28: #{gat_encoder_forward.1} parent=1 // pred_region
      _
    $region29: #{gat_encoder_forward.1} parent=1 // pred_fallthru
      _
    // Predicated region
    $region30: #{gat_encoder_forward.1} parent=1 // pred_check
      _
    $region31: #{gat_encoder_forward.1} parent=1 // pred_check_branch
      %39 = sbr.rel (0) target = $region33
    $region32: #{gat_encoder_forward.1} parent=1 // pred_region
      _
    $region33: #{gat_encoder_forward.1} parent=1 // pred_fallthru
      _
    // Predicated region
    $region34: #{gat_encoder_forward.1} parent=1 // pred_check
      _
    $region35: #{gat_encoder_forward.1} parent=1 // pred_check_branch
      %41 = sbr.rel (0) target = $region37
    $region36: #{gat_encoder_forward.1} parent=1 // pred_region
      _
    $region37: #{gat_encoder_forward.1} parent=1 // pred_fallthru
      _
    // Predicated region
    $region38: #{gat_encoder_forward.1} parent=1 // pred_check
      _
    $region39: #{gat_encoder_forward.1} parent=1 // pred_check_branch
      %43 = sbr.rel (0) target = $region41
    $region40: #{gat_encoder_forward.1} parent=1 // pred_region
      _
    $region41: #{gat_encoder_forward.1} parent=1 // pred_fallthru
      _
    // Predicated region
    $region42: #{gat_encoder_forward.1} parent=1 // pred_check
      _
    $region43: #{gat_encoder_forward.1} parent=1 // pred_check_branch
      %45 = sbr.rel (0) target = $region45
    $region44: #{gat_encoder_forward.1} parent=1 // pred_region
      %47 = dma.done [#allocation4], 64
    $region45: #{gat_encoder_forward.1} parent=1 // pred_fallthru
      _
    %48 = sfence
    %v49 = vld [vmem:[%s5] sm:$0x7f]
    %v50 = vld [vmem:[%s0] sm:$0xff]
    %v51 = vperm.slane %v49, 6
    %vm52 = vcmask 48128
    %v54 = vsel %vm52, %v50, 0
    %vm56 = vcmask 1045504
    %v58 = vsel %vm56, %v49, 0
    %60 = vmatpush.msra.mxu0 0.0
    %61 = vmatpush.msra.mxu0 0.0
    %62 = vmatpush.msra.mxu0 0.0
    %63 = vmatpush.msra.mxu0 0.0
    %64 = vmatpush.msra.mxu0 0.0
    %65 = vmatpush.msra.mxu0 0.0
    %66 = vmatpush.msra.mxu0 0.0
    %67 = vmatpush.msra.mxu0 0.0
    %68 = vmatpush.msra.mxu0 0.0
    %69 = vmatpush.msra.mxu0 0.0
    %70 = vmatpush.msra.mxu0 0.0
    %71 = vmatpush.msra.mxu0 0.0
    %72 = vmatpush.msra.mxu0 0.0
    %73 = vmatpush.msra.mxu0 0.0
    %74 = vmatpush.msra.mxu0 0.0
    %75 = vmatpush.msra.mxu0 %v58
    %76 = vmatmul.f32.gmra.mxu0 %v54
    %v77 = vpop.f32.mrf.mxu0
    %v78 = vadd.f32 %v51, %v77
    %79 = vdwg.mxu0
    %v80 = vmax.f32 %v78, 0.0
    %v81 = vld [vmem:[%s6] sm:$0x1f]
    %v82 = vld [vmem:[%s1] sm:$0xff]
    %v83 = vld [vmem:[%s1 + $0x8] sm:$0xff]
    %v84 = vperm.slane %v81, 4
    %vm85 = vcmask 31744
    %v87 = vsel %vm85, %v82, 0
    %v90 = vsel %vm85, %v83, 0
    %vm92 = vcmask 1043456
    %v94 = vsel %vm92, %v81, 0
    %96 = vmatpush.msra.mxu0 0.0
    %97 = vmatpush.msra.mxu0 0.0
    %98 = vmatpush.msra.mxu0 0.0
    %99 = vmatpush.msra.mxu0 0.0
    %100 = vmatpush.msra.mxu0 0.0
    %101 = vmatpush.msra.mxu0 0.0
    %102 = vmatpush.msra.mxu0 0.0
    %103 = vmatpush.msra.mxu0 0.0
    %104 = vmatpush.msra.mxu0 0.0
    %105 = vmatpush.msra.mxu0 0.0
    %106 = vmatpush.msra.mxu0 0.0
    %107 = vmatpush.msra.mxu0 0.0
    %108 = vmatpush.msra.mxu0 0.0
    %109 = vmatpush.msra.mxu0 0.0
    %110 = vmatpush.msra.mxu0 0.0
    %111 = vmatpush.msra.mxu0 %v94
    %112 = vmatmul.f32.gmra.mxu0 %v87
    %v113 = vpop.f32.mrf.mxu0
    %v114 = vadd.f32 %v84, %v113
    %115 = vmatmul.f32.gmra.mxu0 %v90
    %v116 = vpop.f32.mrf.mxu0
    %v117 = vadd.f32 %v84, %v116
    %118 = vdwg.mxu0
    %v119 = vmax.f32 %v114, 0.0
    %v120 = vmax.f32 %v117, 0.0
    %v121 = vld [vmem:[%s2] sm:$0xff]
    %v122 = vld [vmem:[%s2 + $0x8] sm:$0xff]
    %v123 = vld [vmem:[%s3] sm:$0x3]
    %v124 = vlaneseq
    %v125 = vand.u32 %v124, 127
    %126 = vset.pattern.permute.xlu0 0
    %127 = vperm.xlu0 %126, %v121
    %v128 = vpop.permute.xlu0 %127
    %129 = vset.pattern.permute.xlu0 0
    %130 = vperm.xlu0 %129, %v122
    %v131 = vpop.permute.xlu0 %130
    %vm132 = vcmp.eq.s32.totalorder %v125, %v128
    %vm133 = vcmp.eq.s32.totalorder %v125, %v131
    %v134 = vsel %vm132, 1, 0
    %v135 = vsel %vm133, 1, 0
    %v136 = vcvt.s32.f32 %v134
    %v137 = vcvt.s32.f32 %v135
    %138 = vset.pattern.permute.xlu0 1
    %139 = vperm.xlu0 %138, %v121
    %v140 = vpop.permute.xlu0 %139
    %141 = vset.pattern.permute.xlu0 1
    %142 = vperm.xlu0 %141, %v122
    %v143 = vpop.permute.xlu0 %142
    %vm144 = vcmp.eq.s32.totalorder %v125, %v140
    %vm145 = vcmp.eq.s32.totalorder %v125, %v143
    %v146 = vsel %vm144, 1, 0
    %v147 = vsel %vm145, 1, 0
    %v148 = vcvt.s32.f32 %v146
    %v149 = vcvt.s32.f32 %v147
    %v150 = vlaneseq
    %v151 = vshrl.u32 %v150, 7
    %v152 = vperm.slane %v123, 1
    %vm153 = vcmp.eq.s32.totalorder %v151, %v152
    %v154 = vrot.slane %v123, 1
    %vm155 = vcmp.ne.s32.totalorder %v123, %v154
    %v156 = vsel %vm155, 1, 0
    %v157 = vperm.slane %v156, 0
    %vm158 = vcmp.eq.s32.totalorder %v157, 1
    %vm159 = vmand %vm153, %vm158
    %v160 = vsel %vm159, 1, 0
    %v161 = vcvt.s32.f32 %v160
    %vm162 = vcmask 130048
    %v164 = vsel %vm162, %v161, 0
    %166 = vmatpush.msra.mxu0 0.0
    %167 = vmatpush.msra.mxu0 0.0
    %168 = vmatpush.msra.mxu0 0.0
    %169 = vmatpush.msra.mxu0 0.0
    %170 = vmatpush.msra.mxu0 0.0
    %171 = vmatpush.msra.mxu0 0.0
    %172 = vmatpush.msra.mxu0 0.0
    %173 = vmatpush.msra.mxu0 0.0
    %174 = vmatpush.msra.mxu0 0.0
    %175 = vmatpush.msra.mxu0 0.0
    %176 = vmatpush.msra.mxu0 0.0
    %177 = vmatpush.msra.mxu0 0.0
    %178 = vmatpush.msra.mxu0 0.0
    %179 = vmatpush.msra.mxu0 0.0
    %180 = vmatpush.msra.mxu0 %v120
    %181 = vmatpush.msra.mxu0 %v119
    %182 = vmatmul.f32.gmra.mxu0 %v164
    %v183 = vpop.f32.mrf.mxu0
    %v184 = vadd.f32 0.0, %v183
    %185 = vdwg.mxu0
    %v186 = vmax.f32 %v184, 1.0
    %v187 = vrcp.pop %v186
    %v188 = vmul.f32 %v186, %v187
    %v189 = vsub.f32 1.0, %v188
    %v190 = vmul.f32 %v187, %v189
    %v191 = vadd.f32 %v187, %v190
    %vm192 = vweird.f32 %v186
    %vm193 = vweird.f32 %v187
    %vm194 = vmor %vm192, %vm193
    %v195 = vsel %vm194, %v187, %v191
    %v196 = vand.u32 2147483647, %v186
    %vm197 = vcmp.eq.f32.partialorder %v196, 8.507059e+37
    %v198 = vand.u32 %v186, 2147483648
    %v199 = vor.u32 1.1754944e-38, %v198
    %v200 = vsel %vm197, %v199, %v195
    %202 = vset.pattern.permute.xlu0 32
    %203 = vperm.xlu0 %202, %v200
    %v204 = vpop.permute.xlu0 %203
    %v206 = vmul.f32 %v184, %v204
    %v207 = vld [vmem:[%s8] sm:$0xff]
    %v208 = vld [vmem:[%s8 + $0x8] sm:$0xff]
    %v209 = vld [vmem:[%s8 + $0x10] sm:$0xff]
    %v210 = vld [vmem:[%s8 + $0x18] sm:$0xff]
    %vm211 = vcmask 261120
    %v213 = vsel %vm211, %v119, 0
    %v216 = vsel %vm211, %v120, 0
    %218 = vmatpush.msra.mxu0 0.0
    %219 = vmatpush.msra.mxu0 0.0
    %220 = vmatpush.msra.mxu0 0.0
    %221 = vmatpush.msra.mxu0 0.0
    %222 = vmatpush.msra.mxu0 0.0
    %223 = vmatpush.msra.mxu0 0.0
    %224 = vmatpush.msra.mxu0 0.0
    %225 = vmatpush.msra.mxu0 0.0
    %226 = vmatpush.msra.mxu0 0.0
    %227 = vmatpush.msra.mxu0 0.0
    %228 = vmatpush.msra.mxu0 0.0
    %229 = vmatpush.msra.mxu0 0.0
    %230 = vmatpush.msra.mxu0 %v210
    %231 = vmatpush.msra.mxu0 %v209
    %232 = vmatpush.msra.mxu0 %v208
    %233 = vmatpush.msra.mxu0 %v207
    %234 = vmatmul.f32.gmra.mxu0 %v213
    %v235 = vpop.f32.mrf.mxu0
    %v236 = vadd.f32 0.0, %v235
    %237 = vmatmul.f32.gmra.mxu0 %v216
    %v238 = vpop.f32.mrf.mxu0
    %v239 = vadd.f32 0.0, %v238
    %240 = vdwg.mxu0
    %v242 = vsel %vm211, %v206, 0
    %244 = vmatpush.msra.mxu0 0.0
    %245 = vmatpush.msra.mxu0 0.0
    %246 = vmatpush.msra.mxu0 0.0
    %247 = vmatpush.msra.mxu0 0.0
    %248 = vmatpush.msra.mxu0 0.0
    %249 = vmatpush.msra.mxu0 0.0
    %250 = vmatpush.msra.mxu0 0.0
    %251 = vmatpush.msra.mxu0 0.0
    %252 = vmatpush.msra.mxu0 0.0
    %253 = vmatpush.msra.mxu0 0.0
    %254 = vmatpush.msra.mxu0 0.0
    %255 = vmatpush.msra.mxu0 0.0
    %256 = vmatpush.msra.mxu0 %v210
    %257 = vmatpush.msra.mxu0 %v209
    %258 = vmatpush.msra.mxu0 %v208
    %259 = vmatpush.msra.mxu0 %v207
    %260 = vmatmul.f32.gmra.mxu0 %v242
    %v261 = vpop.f32.mrf.mxu0
    %v262 = vadd.f32 0.0, %v261
    %263 = vdwg.mxu0
    %v264 = vld [vmem:[%s9] sm:$0x3f]
    %v265 = vld [vmem:[%s7] sm:$0xff]
    %v266 = vld [vmem:[%s7 + $0x8] sm:$0xff]
    %v267 = vld [vmem:[%s7 + $0x10] sm:$0xff]
    %v268 = vld [vmem:[%s7 + $0x18] sm:$0xff]
    %v269 = vld [vmem:[%s7 + $0x60] sm:$0x1]
    %v271 = vsel %vm211, %v80, 0
    %273 = vmatpush.msra.mxu0 0.0
    %274 = vmatpush.msra.mxu0 0.0
    %275 = vmatpush.msra.mxu0 0.0
    %276 = vmatpush.msra.mxu0 0.0
    %277 = vmatpush.msra.mxu0 0.0
    %278 = vmatpush.msra.mxu0 0.0
    %279 = vmatpush.msra.mxu0 0.0
    %280 = vmatpush.msra.mxu0 0.0
    %281 = vmatpush.msra.mxu0 0.0
    %282 = vmatpush.msra.mxu0 0.0
    %283 = vmatpush.msra.mxu0 0.0
    %284 = vmatpush.msra.mxu0 0.0
    %285 = vmatpush.msra.mxu0 %v268
    %286 = vmatpush.msra.mxu0 %v267
    %287 = vmatpush.msra.mxu0 %v266
    %288 = vmatpush.msra.mxu0 %v265
    %289 = vmatmul.f32.gmra.mxu0 %v271
    %v290 = vpop.f32.mrf.mxu0
    %v291 = vadd.f32 0.0, %v290
    %292 = vdwg.mxu0
    %v293 = vperm.slane %v269, 0
    %v294 = vadd.f32 %v293, %v291
    %vm295 = vcmask 64512
    %v297 = vsel %vm295, %v136, 0
    %v300 = vsel %vm295, %v137, 0
    %302 = vmatpush.msra.mxu0 0.0
    %303 = vmatpush.msra.mxu0 0.0
    %304 = vmatpush.msra.mxu0 0.0
    %305 = vmatpush.msra.mxu0 0.0
    %306 = vmatpush.msra.mxu0 0.0
    %307 = vmatpush.msra.mxu0 0.0
    %308 = vmatpush.msra.mxu0 0.0
    %309 = vmatpush.msra.mxu0 0.0
    %310 = vmatpush.msra.mxu0 0.0
    %311 = vmatpush.msra.mxu0 0.0
    %312 = vmatpush.msra.mxu0 0.0
    %313 = vmatpush.msra.mxu0 0.0
    %314 = vmatpush.msra.mxu0 0.0
    %315 = vmatpush.msra.mxu0 0.0
    %316 = vmatpush.msra.mxu0 0.0
    %317 = vmatpush.msra.mxu0 %v294
    %318 = vmatmul.f32.gmra.mxu0 %v297
    %v319 = vpop.f32.mrf.mxu0
    %v320 = vadd.f32 0.0, %v319
    %321 = vmatmul.f32.gmra.mxu0 %v300
    %v322 = vpop.f32.mrf.mxu0
    %v323 = vadd.f32 0.0, %v322
    %324 = vdwg.mxu0
    %326 = vrot.lane.b32.xlu0 %v294, 96
    %v327 = vpop.permute.xlu0 %326
    %v330 = vsel %vm295, %v148, 0
    %v333 = vsel %vm295, %v149, 0
    %335 = vmatpush.msra.mxu0 0.0
    %336 = vmatpush.msra.mxu0 0.0
    %337 = vmatpush.msra.mxu0 0.0
    %338 = vmatpush.msra.mxu0 0.0
    %339 = vmatpush.msra.mxu0 0.0
    %340 = vmatpush.msra.mxu0 0.0
    %341 = vmatpush.msra.mxu0 0.0
    %342 = vmatpush.msra.mxu0 0.0
    %343 = vmatpush.msra.mxu0 0.0
    %344 = vmatpush.msra.mxu0 0.0
    %345 = vmatpush.msra.mxu0 0.0
    %346 = vmatpush.msra.mxu0 0.0
    %347 = vmatpush.msra.mxu0 0.0
    %348 = vmatpush.msra.mxu0 0.0
    %349 = vmatpush.msra.mxu0 0.0
    %350 = vmatpush.msra.mxu0 %v327
    %351 = vmatmul.f32.gmra.mxu0 %v330
    %v352 = vpop.f32.mrf.mxu0
    %v353 = vadd.f32 0.0, %v352
    %354 = vmatmul.f32.gmra.mxu0 %v333
    %v355 = vpop.f32.mrf.mxu0
    %v356 = vadd.f32 0.0, %v355
    %357 = vdwg.mxu0
    %v358 = vadd.f32 %v320, %v353
    %v359 = vadd.f32 %v323, %v356
    %v360 = vadd.f32 %v358, %v236
    %v361 = vadd.f32 %v359, %v239
    %vm362 = vcmp.gt.f32.partialorder %v360, 0.0
    %vm363 = vcmp.gt.f32.partialorder %v361, 0.0
    %v364 = vmul.f32 %v360, 0.2
    %v365 = vmul.f32 %v361, 0.2
    %v366 = vsel %vm362, %v360, %v364
    %v367 = vsel %vm363, %v361, %v365
    %v368 = vadd.f32 %v294, %v327
    %v369 = vadd.f32 %v368, %v262
    %vm370 = vcmp.gt.f32.partialorder %v369, 0.0
    %v371 = vmul.f32 %v369, 0.2
    %v372 = vsel %vm370, %v369, %v371
    %v374 = vsel %vm211, %v264, 0
    %v377 = vsel %vm211, %v366, 0
    %v380 = vsel %vm211, %v367, 0
    %382 = vmatpush.xpose.msra.mxu0 0.0
    %383 = vmatpush.xpose.msra.mxu0 0.0
    %384 = vmatpush.xpose.msra.mxu0 0.0
    %385 = vmatpush.xpose.msra.mxu0 0.0
    %386 = vmatpush.xpose.msra.mxu0 0.0
    %387 = vmatpush.xpose.msra.mxu0 0.0
    %388 = vmatpush.xpose.msra.mxu0 0.0
    %389 = vmatpush.xpose.msra.mxu0 0.0
    %390 = vmatpush.xpose.msra.mxu0 0.0
    %391 = vmatpush.xpose.msra.mxu0 0.0
    %392 = vmatpush.xpose.msra.mxu0 0.0
    %393 = vmatpush.xpose.msra.mxu0 0.0
    %394 = vmatpush.xpose.msra.mxu0 0.0
    %395 = vmatpush.xpose.msra.mxu0 0.0
    %396 = vmatpush.xpose.msra.mxu0 %v380
    %397 = vmatpush.xpose.msra.mxu0 %v377
    %398 = vmatmul.f32.gmra.mxu0 %v374
    %v399 = vpop.f32.mrf.mxu0
    %v400 = vadd.f32 0.0, %v399
    %401 = vdwg.mxu0
    %v402 = vperm.slane %v264, 0
    %v403 = vmul.f32 %v372, %v402
    %v404 = vsel %vm211, %v403, 0.0
    %405 = vadd.xlane.f32.xlu0 %v404
    %v406 = vpop.xlane.xlu0 %405
    %vm407 = vcmp.gt.f32.partialorder %v161, 0.0
    %v408 = vperm.slane %v400, 0
    %v409 = vsel %vm407, %v408, -1e+30
    %v410 = vsel %vm162, %v409, -inf
    %411 = vmax.xlane.f32.xlu0 %v410
    %v412 = vpop.xlane.xlu0 %411
    %v413 = vmax.f32 %v412, %v406
    %v414 = vsub.f32 %v409, %v413
    %v415 = vmul.f32 %v414, 1.442695
    %v416 = vpow.pop %v415
    %v417 = vsub.f32 %v406, %v413
    %v418 = vmul.f32 %v417, 1.442695
    %v419 = vpow.pop %v418
    %v420 = vmul.f32 %v419, %v294
    %v422 = vsel %vm162, %v416, 0
    %424 = vmatpush.msra.mxu0 0.0
    %425 = vmatpush.msra.mxu0 0.0
    %426 = vmatpush.msra.mxu0 0.0
    %427 = vmatpush.msra.mxu0 0.0
    %428 = vmatpush.msra.mxu0 0.0
    %429 = vmatpush.msra.mxu0 0.0
    %430 = vmatpush.msra.mxu0 0.0
    %431 = vmatpush.msra.mxu0 0.0
    %432 = vmatpush.msra.mxu0 0.0
    %433 = vmatpush.msra.mxu0 0.0
    %434 = vmatpush.msra.mxu0 0.0
    %435 = vmatpush.msra.mxu0 0.0
    %436 = vmatpush.msra.mxu0 0.0
    %437 = vmatpush.msra.mxu0 0.0
    %438 = vmatpush.msra.mxu0 %v323
    %439 = vmatpush.msra.mxu0 %v320
    %440 = vmatmul.f32.gmra.mxu0 %v422
    %v441 = vpop.f32.mrf.mxu0
    %v442 = vadd.f32 %v420, %v441
    %443 = vdwg.mxu0
    %v444 = vrcp.pop %v442
    %v445 = vmul.f32 %v442, %v444
    %v446 = vsub.f32 1.0, %v445
    %v447 = vmul.f32 %v444, %v446
    %v448 = vadd.f32 %v444, %v447
    %vm449 = vweird.f32 %v442
    %vm450 = vweird.f32 %v444
    %vm451 = vmor %vm449, %vm450
    %v452 = vsel %vm451, %v444, %v448
    %v453 = vand.u32 2147483647, %v442
    %vm454 = vcmp.eq.f32.partialorder %v453, 8.507059e+37
    %v455 = vand.u32 %v442, 2147483648
    %v456 = vor.u32 1.1754944e-38, %v455
    %v457 = vsel %vm454, %v456, %v452
    %459 = vset.pattern.permute.xlu0 64
    %460 = vperm.xlu0 %459, %v457
    %v461 = vpop.permute.xlu0 %460
    %v463 = vmul.f32 %v442, %v461
    %v464 = vperm.slane %v264, 3
    %v465 = vadd.f32 %v463, %v464
    %v466 = vmax.f32 %v465, 0.0
    %s467 = sld [smem:[#allocation2]]
    %v468 = vstv %s467
    %v469 = vmul.f32 %v80, %v468
    %s470 = scalar_lea.vmem %s7, 104
    %v471 = vld [vmem:[%s470] sm:$0xff]
    %v472 = vld [vmem:[%s470 + $0x8] sm:$0xff]
    %v473 = vld [vmem:[%s470 + $0x10] sm:$0xff]
    %v474 = vld [vmem:[%s470 + $0x18] sm:$0xff]
    %v475 = vld [vmem:[%s470 + $0x20] sm:$0xff]
    %v476 = vld [vmem:[%s470 + $0x28] sm:$0xff]
    %v477 = vld [vmem:[%s470 + $0x30] sm:$0xff]
    %v478 = vld [vmem:[%s470 + $0x38] sm:$0xff]
    %v479 = vld [vmem:[%s470 + $0x60] sm:$0x1]
    %v481 = vsel %vm211, %v466, 0
    %483 = vmatpush.msra.mxu0 0.0
    %484 = vmatpush.msra.mxu0 0.0
    %485 = vmatpush.msra.mxu0 0.0
    %486 = vmatpush.msra.mxu0 0.0
    %487 = vmatpush.msra.mxu0 0.0
    %488 = vmatpush.msra.mxu0 0.0
    %489 = vmatpush.msra.mxu0 0.0
    %490 = vmatpush.msra.mxu0 0.0
    %491 = vmatpush.msra.mxu0 0.0
    %492 = vmatpush.msra.mxu0 0.0
    %493 = vmatpush.msra.mxu0 0.0
    %494 = vmatpush.msra.mxu0 0.0
    %495 = vmatpush.msra.mxu0 %v474
    %496 = vmatpush.msra.mxu0 %v473
    %497 = vmatpush.msra.mxu0 %v472
    %498 = vmatpush.msra.mxu0 %v471
    %499 = vmatmul.f32.gmra.mxu0 %v481
    %v500 = vpop.f32.mrf.mxu0
    %v501 = vadd.f32 0.0, %v500
    %502 = vdwg.mxu0
    %v503 = vperm.slane %v479, 0
    %v504 = vadd.f32 %v503, %v501
    %v506 = vsel %vm211, %v469, 0
    %508 = vmatpush.msra.mxu0 0.0
    %509 = vmatpush.msra.mxu0 0.0
    %510 = vmatpush.msra.mxu0 0.0
    %511 = vmatpush.msra.mxu0 0.0
    %512 = vmatpush.msra.mxu0 0.0
    %513 = vmatpush.msra.mxu0 0.0
    %514 = vmatpush.msra.mxu0 0.0
    %515 = vmatpush.msra.mxu0 0.0
    %516 = vmatpush.msra.mxu0 0.0
    %517 = vmatpush.msra.mxu0 0.0
    %518 = vmatpush.msra.mxu0 0.0
    %519 = vmatpush.msra.mxu0 0.0
    %520 = vmatpush.msra.mxu0 %v478
    %521 = vmatpush.msra.mxu0 %v477
    %522 = vmatpush.msra.mxu0 %v476
    %523 = vmatpush.msra.mxu0 %v475
    %524 = vmatmul.f32.gmra.mxu0 %v506
    %v525 = vpop.f32.mrf.mxu0
    %v526 = vadd.f32 0.0, %v525
    %527 = vdwg.mxu0
    %v528 = vadd.f32 %v504, %v526
    %529 = vmatpush.msra.mxu0 0.0
    %530 = vmatpush.msra.mxu0 0.0
    %531 = vmatpush.msra.mxu0 0.0
    %532 = vmatpush.msra.mxu0 0.0
    %533 = vmatpush.msra.mxu0 0.0
    %534 = vmatpush.msra.mxu0 0.0
    %535 = vmatpush.msra.mxu0 0.0
    %536 = vmatpush.msra.mxu0 0.0
    %537 = vmatpush.msra.mxu0 0.0
    %538 = vmatpush.msra.mxu0 0.0
    %539 = vmatpush.msra.mxu0 0.0
    %540 = vmatpush.msra.mxu0 0.0
    %541 = vmatpush.msra.mxu0 0.0
    %542 = vmatpush.msra.mxu0 0.0
    %543 = vmatpush.msra.mxu0 0.0
    %544 = vmatpush.msra.mxu0 %v528
    %545 = vmatmul.f32.gmra.mxu0 %v297
    %v546 = vpop.f32.mrf.mxu0
    %v547 = vadd.f32 0.0, %v546
    %548 = vmatmul.f32.gmra.mxu0 %v300
    %v549 = vpop.f32.mrf.mxu0
    %v550 = vadd.f32 0.0, %v549
    %551 = vdwg.mxu0
    %553 = vrot.lane.b32.xlu0 %v528, 96
    %v554 = vpop.permute.xlu0 %553
    %556 = vmatpush.msra.mxu0 0.0
    %557 = vmatpush.msra.mxu0 0.0
    %558 = vmatpush.msra.mxu0 0.0
    %559 = vmatpush.msra.mxu0 0.0
    %560 = vmatpush.msra.mxu0 0.0
    %561 = vmatpush.msra.mxu0 0.0
    %562 = vmatpush.msra.mxu0 0.0
    %563 = vmatpush.msra.mxu0 0.0
    %564 = vmatpush.msra.mxu0 0.0
    %565 = vmatpush.msra.mxu0 0.0
    %566 = vmatpush.msra.mxu0 0.0
    %567 = vmatpush.msra.mxu0 0.0
    %568 = vmatpush.msra.mxu0 0.0
    %569 = vmatpush.msra.mxu0 0.0
    %570 = vmatpush.msra.mxu0 0.0
    %571 = vmatpush.msra.mxu0 %v554
    %572 = vmatmul.f32.gmra.mxu0 %v330
    %v573 = vpop.f32.mrf.mxu0
    %v574 = vadd.f32 0.0, %v573
    %575 = vmatmul.f32.gmra.mxu0 %v333
    %v576 = vpop.f32.mrf.mxu0
    %v577 = vadd.f32 0.0, %v576
    %578 = vdwg.mxu0
    %v579 = vadd.f32 %v547, %v574
    %v580 = vadd.f32 %v550, %v577
    %583 = vrot.lane.b32.xlu0 %v236, 96
    %v584 = vpop.permute.xlu0 %583
    %585 = vrot.lane.b32.xlu0 %v239, 96
    %v586 = vpop.permute.xlu0 %585
    %v589 = vadd.f32 %v579, %v584
    %v590 = vadd.f32 %v580, %v586
    %vm591 = vcmp.gt.f32.partialorder %v589, 0.0
    %vm592 = vcmp.gt.f32.partialorder %v590, 0.0
    %v593 = vmul.f32 %v589, 0.2
    %v594 = vmul.f32 %v590, 0.2
    %v595 = vsel %vm591, %v589, %v593
    %v596 = vsel %vm592, %v590, %v594
    %v597 = vadd.f32 %v528, %v554
    %599 = vrot.lane.b32.xlu0 %v262, 96
    %v600 = vpop.permute.xlu0 %599
    %v602 = vadd.f32 %v597, %v600
    %vm603 = vcmp.gt.f32.partialorder %v602, 0.0
    %v604 = vmul.f32 %v602, 0.2
    %v605 = vsel %vm603, %v602, %v604
    %v606 = vrot.slane %v264, 1
    %v607 = vsel %vm211, %v606, 0
    %v610 = vsel %vm211, %v595, 0
    %v613 = vsel %vm211, %v596, 0
    %615 = vmatpush.xpose.msra.mxu0 0.0
    %616 = vmatpush.xpose.msra.mxu0 0.0
    %617 = vmatpush.xpose.msra.mxu0 0.0
    %618 = vmatpush.xpose.msra.mxu0 0.0
    %619 = vmatpush.xpose.msra.mxu0 0.0
    %620 = vmatpush.xpose.msra.mxu0 0.0
    %621 = vmatpush.xpose.msra.mxu0 0.0
    %622 = vmatpush.xpose.msra.mxu0 0.0
    %623 = vmatpush.xpose.msra.mxu0 0.0
    %624 = vmatpush.xpose.msra.mxu0 0.0
    %625 = vmatpush.xpose.msra.mxu0 0.0
    %626 = vmatpush.xpose.msra.mxu0 0.0
    %627 = vmatpush.xpose.msra.mxu0 0.0
    %628 = vmatpush.xpose.msra.mxu0 0.0
    %629 = vmatpush.xpose.msra.mxu0 %v613
    %630 = vmatpush.xpose.msra.mxu0 %v610
    %631 = vmatmul.f32.gmra.mxu0 %v607
    %v632 = vpop.f32.mrf.mxu0
    %v633 = vadd.f32 0.0, %v632
    %634 = vdwg.mxu0
    %v635 = vperm.slane %v264, 1
    %v636 = vmul.f32 %v605, %v635
    %v637 = vsel %vm211, %v636, 0.0
    %638 = vadd.xlane.f32.xlu0 %v637
    %v639 = vpop.xlane.xlu0 %638
    %v640 = vperm.slane %v633, 0
    %v641 = vsel %vm407, %v640, -1e+30
    %v642 = vsel %vm162, %v641, -inf
    %643 = vmax.xlane.f32.xlu0 %v642
    %v644 = vpop.xlane.xlu0 %643
    %v645 = vmax.f32 %v644, %v639
    %v646 = vsub.f32 %v641, %v645
    %v647 = vmul.f32 %v646, 1.442695
    %v648 = vpow.pop %v647
    %v649 = vsub.f32 %v639, %v645
    %v650 = vmul.f32 %v649, 1.442695
    %v651 = vpow.pop %v650
    %v652 = vmul.f32 %v651, %v528
    %v654 = vsel %vm162, %v648, 0
    %656 = vmatpush.msra.mxu0 0.0
    %657 = vmatpush.msra.mxu0 0.0
    %658 = vmatpush.msra.mxu0 0.0
    %659 = vmatpush.msra.mxu0 0.0
    %660 = vmatpush.msra.mxu0 0.0
    %661 = vmatpush.msra.mxu0 0.0
    %662 = vmatpush.msra.mxu0 0.0
    %663 = vmatpush.msra.mxu0 0.0
    %664 = vmatpush.msra.mxu0 0.0
    %665 = vmatpush.msra.mxu0 0.0
    %666 = vmatpush.msra.mxu0 0.0
    %667 = vmatpush.msra.mxu0 0.0
    %668 = vmatpush.msra.mxu0 0.0
    %669 = vmatpush.msra.mxu0 0.0
    %670 = vmatpush.msra.mxu0 %v550
    %671 = vmatpush.msra.mxu0 %v547
    %672 = vmatmul.f32.gmra.mxu0 %v654
    %v673 = vpop.f32.mrf.mxu0
    %v674 = vadd.f32 %v652, %v673
    %675 = vdwg.mxu0
    %v676 = vrcp.pop %v674
    %v677 = vmul.f32 %v674, %v676
    %v678 = vsub.f32 1.0, %v677
    %v679 = vmul.f32 %v676, %v678
    %v680 = vadd.f32 %v676, %v679
    %vm681 = vweird.f32 %v674
    %vm682 = vweird.f32 %v676
    %vm683 = vmor %vm681, %vm682
    %v684 = vsel %vm683, %v676, %v680
    %v685 = vand.u32 2147483647, %v674
    %vm686 = vcmp.eq.f32.partialorder %v685, 8.507059e+37
    %v687 = vand.u32 %v674, 2147483648
    %v688 = vor.u32 1.1754944e-38, %v687
    %v689 = vsel %vm686, %v688, %v684
    %691 = vset.pattern.permute.xlu0 64
    %692 = vperm.xlu0 %691, %v689
    %v693 = vpop.permute.xlu0 %692
    %v695 = vmul.f32 %v674, %v693
    %v696 = vperm.slane %v264, 4
    %v697 = vadd.f32 %v695, %v696
    %v698 = vmax.f32 %v697, 0.0
    %s699 = sld [smem:[#allocation2 + $0x80]]
    %v700 = vstv %s699
    %v701 = vmul.f32 %v80, %v700
    %s702 = sld [smem:[#allocation2 + $0x81]]
    %v703 = vstv %s702
    %v704 = vmul.f32 %v466, %v703
    %s705 = scalar_lea.vmem %s7, 208
    %v706 = vld [vmem:[%s705] sm:$0xff]
    %v707 = vld [vmem:[%s705 + $0x8] sm:$0xff]
    %v708 = vld [vmem:[%s705 + $0x10] sm:$0xff]
    %v709 = vld [vmem:[%s705 + $0x18] sm:$0xff]
    %v710 = vld [vmem:[%s705 + $0x20] sm:$0xff]
    %v711 = vld [vmem:[%s705 + $0x28] sm:$0xff]
    %v712 = vld [vmem:[%s705 + $0x30] sm:$0xff]
    %v713 = vld [vmem:[%s705 + $0x38] sm:$0xff]
    %v714 = vld [vmem:[%s705 + $0x40] sm:$0xff]
    %v715 = vld [vmem:[%s705 + $0x48] sm:$0xff]
    %v716 = vld [vmem:[%s705 + $0x50] sm:$0xff]
    %v717 = vld [vmem:[%s705 + $0x58] sm:$0xff]
    %v718 = vld [vmem:[%s705 + $0x60] sm:$0x1]
    %v720 = vsel %vm211, %v698, 0
    %722 = vmatpush.msra.mxu0 0.0
    %723 = vmatpush.msra.mxu0 0.0
    %724 = vmatpush.msra.mxu0 0.0
    %725 = vmatpush.msra.mxu0 0.0
    %726 = vmatpush.msra.mxu0 0.0
    %727 = vmatpush.msra.mxu0 0.0
    %728 = vmatpush.msra.mxu0 0.0
    %729 = vmatpush.msra.mxu0 0.0
    %730 = vmatpush.msra.mxu0 0.0
    %731 = vmatpush.msra.mxu0 0.0
    %732 = vmatpush.msra.mxu0 0.0
    %733 = vmatpush.msra.mxu0 0.0
    %734 = vmatpush.msra.mxu0 %v709
    %735 = vmatpush.msra.mxu0 %v708
    %736 = vmatpush.msra.mxu0 %v707
    %737 = vmatpush.msra.mxu0 %v706
    %738 = vmatmul.f32.gmra.mxu0 %v720
    %v739 = vpop.f32.mrf.mxu0
    %v740 = vadd.f32 0.0, %v739
    %741 = vdwg.mxu0
    %v742 = vperm.slane %v718, 0
    %v743 = vadd.f32 %v742, %v740
    %v745 = vsel %vm211, %v701, 0
    %747 = vmatpush.msra.mxu0 0.0
    %748 = vmatpush.msra.mxu0 0.0
    %749 = vmatpush.msra.mxu0 0.0
    %750 = vmatpush.msra.mxu0 0.0
    %751 = vmatpush.msra.mxu0 0.0
    %752 = vmatpush.msra.mxu0 0.0
    %753 = vmatpush.msra.mxu0 0.0
    %754 = vmatpush.msra.mxu0 0.0
    %755 = vmatpush.msra.mxu0 0.0
    %756 = vmatpush.msra.mxu0 0.0
    %757 = vmatpush.msra.mxu0 0.0
    %758 = vmatpush.msra.mxu0 0.0
    %759 = vmatpush.msra.mxu0 %v713
    %760 = vmatpush.msra.mxu0 %v712
    %761 = vmatpush.msra.mxu0 %v711
    %762 = vmatpush.msra.mxu0 %v710
    %763 = vmatmul.f32.gmra.mxu0 %v745
    %v764 = vpop.f32.mrf.mxu0
    %v765 = vadd.f32 0.0, %v764
    %766 = vdwg.mxu0
    %v767 = vadd.f32 %v743, %v765
    %v769 = vsel %vm211, %v704, 0
    %771 = vmatpush.msra.mxu0 0.0
    %772 = vmatpush.msra.mxu0 0.0
    %773 = vmatpush.msra.mxu0 0.0
    %774 = vmatpush.msra.mxu0 0.0
    %775 = vmatpush.msra.mxu0 0.0
    %776 = vmatpush.msra.mxu0 0.0
    %777 = vmatpush.msra.mxu0 0.0
    %778 = vmatpush.msra.mxu0 0.0
    %779 = vmatpush.msra.mxu0 0.0
    %780 = vmatpush.msra.mxu0 0.0
    %781 = vmatpush.msra.mxu0 0.0
    %782 = vmatpush.msra.mxu0 0.0
    %783 = vmatpush.msra.mxu0 %v717
    %784 = vmatpush.msra.mxu0 %v716
    %785 = vmatpush.msra.mxu0 %v715
    %786 = vmatpush.msra.mxu0 %v714
    %787 = vmatmul.f32.gmra.mxu0 %v769
    %v788 = vpop.f32.mrf.mxu0
    %v789 = vadd.f32 0.0, %v788
    %790 = vdwg.mxu0
    %v791 = vadd.f32 %v767, %v789
    %792 = vmatpush.msra.mxu0 0.0
    %793 = vmatpush.msra.mxu0 0.0
    %794 = vmatpush.msra.mxu0 0.0
    %795 = vmatpush.msra.mxu0 0.0
    %796 = vmatpush.msra.mxu0 0.0
    %797 = vmatpush.msra.mxu0 0.0
    %798 = vmatpush.msra.mxu0 0.0
    %799 = vmatpush.msra.mxu0 0.0
    %800 = vmatpush.msra.mxu0 0.0
    %801 = vmatpush.msra.mxu0 0.0
    %802 = vmatpush.msra.mxu0 0.0
    %803 = vmatpush.msra.mxu0 0.0
    %804 = vmatpush.msra.mxu0 0.0
    %805 = vmatpush.msra.mxu0 0.0
    %806 = vmatpush.msra.mxu0 0.0
    %807 = vmatpush.msra.mxu0 %v791
    %808 = vmatmul.f32.gmra.mxu0 %v297
    %v809 = vpop.f32.mrf.mxu0
    %v810 = vadd.f32 0.0, %v809
    %811 = vmatmul.f32.gmra.mxu0 %v300
    %v812 = vpop.f32.mrf.mxu0
    %v813 = vadd.f32 0.0, %v812
    %814 = vdwg.mxu0
    %816 = vrot.lane.b32.xlu0 %v791, 96
    %v817 = vpop.permute.xlu0 %816
    %819 = vmatpush.msra.mxu0 0.0
    %820 = vmatpush.msra.mxu0 0.0
    %821 = vmatpush.msra.mxu0 0.0
    %822 = vmatpush.msra.mxu0 0.0
    %823 = vmatpush.msra.mxu0 0.0
    %824 = vmatpush.msra.mxu0 0.0
    %825 = vmatpush.msra.mxu0 0.0
    %826 = vmatpush.msra.mxu0 0.0
    %827 = vmatpush.msra.mxu0 0.0
    %828 = vmatpush.msra.mxu0 0.0
    %829 = vmatpush.msra.mxu0 0.0
    %830 = vmatpush.msra.mxu0 0.0
    %831 = vmatpush.msra.mxu0 0.0
    %832 = vmatpush.msra.mxu0 0.0
    %833 = vmatpush.msra.mxu0 0.0
    %834 = vmatpush.msra.mxu0 %v817
    %835 = vmatmul.f32.gmra.mxu0 %v330
    %v836 = vpop.f32.mrf.mxu0
    %v837 = vadd.f32 0.0, %v836
    %838 = vmatmul.f32.gmra.mxu0 %v333
    %v839 = vpop.f32.mrf.mxu0
    %v840 = vadd.f32 0.0, %v839
    %841 = vdwg.mxu0
    %v842 = vadd.f32 %v810, %v837
    %v843 = vadd.f32 %v813, %v840
    %844 = vrot.lane.b32.xlu0 %v236, 64
    %v845 = vpop.permute.xlu0 %844
    %846 = vrot.lane.b32.xlu0 %v239, 64
    %v847 = vpop.permute.xlu0 %846
    %v850 = vadd.f32 %v842, %v845
    %v851 = vadd.f32 %v843, %v847
    %vm852 = vcmp.gt.f32.partialorder %v850, 0.0
    %vm853 = vcmp.gt.f32.partialorder %v851, 0.0
    %v854 = vmul.f32 %v850, 0.2
    %v855 = vmul.f32 %v851, 0.2
    %v856 = vsel %vm852, %v850, %v854
    %v857 = vsel %vm853, %v851, %v855
    %v858 = vadd.f32 %v791, %v817
    %859 = vrot.lane.b32.xlu0 %v262, 64
    %v860 = vpop.permute.xlu0 %859
    %v862 = vadd.f32 %v858, %v860
    %vm863 = vcmp.gt.f32.partialorder %v862, 0.0
    %v864 = vmul.f32 %v862, 0.2
    %v865 = vsel %vm863, %v862, %v864
    %v866 = vrot.slane %v264, 2
    %v867 = vsel %vm211, %v866, 0
    %v870 = vsel %vm211, %v856, 0
    %v873 = vsel %vm211, %v857, 0
    %875 = vmatpush.xpose.msra.mxu0 0.0
    %876 = vmatpush.xpose.msra.mxu0 0.0
    %877 = vmatpush.xpose.msra.mxu0 0.0
    %878 = vmatpush.xpose.msra.mxu0 0.0
    %879 = vmatpush.xpose.msra.mxu0 0.0
    %880 = vmatpush.xpose.msra.mxu0 0.0
    %881 = vmatpush.xpose.msra.mxu0 0.0
    %882 = vmatpush.xpose.msra.mxu0 0.0
    %883 = vmatpush.xpose.msra.mxu0 0.0
    %884 = vmatpush.xpose.msra.mxu0 0.0
    %885 = vmatpush.xpose.msra.mxu0 0.0
    %886 = vmatpush.xpose.msra.mxu0 0.0
    %887 = vmatpush.xpose.msra.mxu0 0.0
    %888 = vmatpush.xpose.msra.mxu0 0.0
    %889 = vmatpush.xpose.msra.mxu0 %v873
    %890 = vmatpush.xpose.msra.mxu0 %v870
    %891 = vmatmul.f32.gmra.mxu0 %v867
    %v892 = vpop.f32.mrf.mxu0
    %v893 = vadd.f32 0.0, %v892
    %894 = vdwg.mxu0
    %v895 = vperm.slane %v264, 2
    %v896 = vmul.f32 %v865, %v895
    %v897 = vsel %vm211, %v896, 0.0
    %898 = vadd.xlane.f32.xlu0 %v897
    %v899 = vpop.xlane.xlu0 %898
    %v900 = vperm.slane %v893, 0
    %v901 = vsel %vm407, %v900, -1e+30
    %v902 = vsel %vm162, %v901, -inf
    %903 = vmax.xlane.f32.xlu0 %v902
    %v904 = vpop.xlane.xlu0 %903
    %v905 = vmax.f32 %v904, %v899
    %v906 = vsub.f32 %v901, %v905
    %v907 = vmul.f32 %v906, 1.442695
    %v908 = vpow.pop %v907
    %v909 = vsub.f32 %v899, %v905
    %v910 = vmul.f32 %v909, 1.442695
    %v911 = vpow.pop %v910
    %v912 = vmul.f32 %v911, %v791
    %v914 = vsel %vm162, %v908, 0
    %916 = vmatpush.msra.mxu0 0.0
    %917 = vmatpush.msra.mxu0 0.0
    %918 = vmatpush.msra.mxu0 0.0
    %919 = vmatpush.msra.mxu0 0.0
    %920 = vmatpush.msra.mxu0 0.0
    %921 = vmatpush.msra.mxu0 0.0
    %922 = vmatpush.msra.mxu0 0.0
    %923 = vmatpush.msra.mxu0 0.0
    %924 = vmatpush.msra.mxu0 0.0
    %925 = vmatpush.msra.mxu0 0.0
    %926 = vmatpush.msra.mxu0 0.0
    %927 = vmatpush.msra.mxu0 0.0
    %928 = vmatpush.msra.mxu0 0.0
    %929 = vmatpush.msra.mxu0 0.0
    %930 = vmatpush.msra.mxu0 %v813
    %931 = vmatpush.msra.mxu0 %v810
    %932 = vmatmul.f32.gmra.mxu0 %v914
    %v933 = vpop.f32.mrf.mxu0
    %v934 = vadd.f32 %v912, %v933
    %935 = vdwg.mxu0
    %v936 = vrcp.pop %v934
    %v937 = vmul.f32 %v934, %v936
    %v938 = vsub.f32 1.0, %v937
    %v939 = vmul.f32 %v936, %v938
    %v940 = vadd.f32 %v936, %v939
    %vm941 = vweird.f32 %v934
    %vm942 = vweird.f32 %v936
    %vm943 = vmor %vm941, %vm942
    %v944 = vsel %vm943, %v936, %v940
    %v945 = vand.u32 2147483647, %v934
    %vm946 = vcmp.eq.f32.partialorder %v945, 8.507059e+37
    %v947 = vand.u32 %v934, 2147483648
    %v948 = vor.u32 1.1754944e-38, %v947
    %v949 = vsel %vm946, %v948, %v944
    %951 = vset.pattern.permute.xlu0 64
    %952 = vperm.xlu0 %951, %v949
    %v953 = vpop.permute.xlu0 %952
    %v955 = vmul.f32 %v934, %v953
    %v956 = vperm.slane %v264, 5
    %v957 = vadd.f32 %v955, %v956
    %v958 = vmax.f32 %v957, 0.0
    %s959 = sld [smem:[#allocation2 + $0x100]]
    %v960 = vstv %s959
    %v961 = vmul.f32 %v80, %v960
    %s962 = sld [smem:[#allocation2 + $0x101]]
    %v963 = vstv %s962
    %v964 = vmul.f32 %v466, %v963
    %s965 = sld [smem:[#allocation2 + $0x102]]
    %v966 = vstv %s965
    %v967 = vmul.f32 %v698, %v966
    %969 = vrot.lane.b32.xlu0 %v961, 32
    %v970 = vpop.permute.xlu0 %969
    %973 = vrot.lane.b32.xlu0 %v964, 64
    %v974 = vpop.permute.xlu0 %973
    %977 = vrot.lane.b32.xlu0 %v967, 96
    %v978 = vpop.permute.xlu0 %977
    %v980 = vsel %vm211, %v958, %v970
    %vm981 = vcmask 523264
    %v982 = vsel %vm981, %v980, %v974
    %vm983 = vcmask 785408
    %v984 = vsel %vm983, %v982, %v978
    %985 = vst [vmem:[#allocation5] sm:$0xff] %v984
    // Predicated region
    $region46: #{gat_encoder_forward.1} parent=1 // pred_check
      _
    $region47: #{gat_encoder_forward.1} parent=1 // pred_check_branch
      %987 = sbr.rel (0) target = $region49
    $region48: #{gat_encoder_forward.1} parent=1 // pred_region
      %989 = vsyncadd [#allocation3], 0
      %s991 = sshll.u32 [#allocation5], 4
      %s992 = int_to_ptr.vmem [resolvable:$true] %s991
      %s993 = sshll.u32 %s10, 4
      %s994 = int_to_ptr.hbm [resolvable:$true] %s993
      %996 = dma.vmem_to_hbm [thread:$0]  %s992, 128, %s994, [#allocation3]
    $region49: #{gat_encoder_forward.1} parent=1 // pred_fallthru
      _
    // Predicated region
    $region50: #{gat_encoder_forward.1} parent=1 // pred_check
      _
    $region51: #{gat_encoder_forward.1} parent=1 // pred_check_branch
      %998 = sbr.rel (0) target = $region53
    $region52: #{gat_encoder_forward.1} parent=1 // pred_region
      %1000 = dma.done [#allocation3], 128
    $region53: #{gat_encoder_forward.1} parent=1 // pred_fallthru
      _
    %1001 = vsyncpa [#allocation3], 1
    %1002 = vsyncpa [#allocation4], 1

</llo_original>
